<compile_context>
chip_gen: v7x
topology: tpu7x:2x2x1
jax: 0.10.0
libtpu: 0.0.40
codegen_flags: <defaults>
</compile_context>

<pallas_src>
from functools import partial

import jax
import jax.numpy as jnp
import numpy as np
from jax import lax
from jax.experimental import pallas as pl
from jax.experimental.pallas import tpu as pltpu

K = 5     # ConvTranspose2d kernel_size
PAD = 2   # ConvTranspose2d padding


# ---------------------------------------------------------------------------
# Fused kernel: out = relu( relu(z @ Wfc + b).bf16 @ M.bf16 )   (f32 accum)
# ---------------------------------------------------------------------------
def proj_kernel(z_ref, wfc_ref, b_ref, m_ref, o_ref):
    # z: (b, Z) f32   wfc: (Z, F) f32   b: (1, F) f32
    # m: (F, Cout*H*W) bf16            o: (b, Cout*H*W) f32
    h = jnp.dot(z_ref[...], wfc_ref[...], preferred_element_type=jnp.float32)
    h = jnp.maximum(h + b_ref[...], 0.0)
    # Second (dominant) matmul in bf16: M is the HBM-DMA bottleneck, so its
    # bytes were halved at init; cast h to match.  Accumulate in f32.
    y = jnp.dot(h.astype(jnp.bfloat16), m_ref[...],
                preferred_element_type=jnp.float32)
    o_ref[...] = jnp.maximum(y, 0.0).astype(o_ref.dtype)


# ---------------------------------------------------------------------------
# One-time parameter transforms (init-time, NOT in the per-call path)
# ---------------------------------------------------------------------------
def _build_convT_matrix(conv_w, H, W):
    """Fold ConvTranspose2d(Cin, Cout, k=5, stride=1, pad=2, bias=False) into a
    dense matrix M (stored bf16) with:
        rows    f   = ci*H*W + i*W + j      (flat NCHW index of the FC output)
        columns col = co*H*W + h*W + w      (flat NCHW index of the conv output)
    so that  out_flat = x_flat @ M  reproduces the transposed convolution:
        out[co, h, w] = sum_{ci,i,j} x[ci,i,j] * W[ci, co, h-i+PAD, w-j+PAD]
    """
    conv_w = np.asarray(conv_w, dtype=np.float32)      # (Cin, Cout, K, K)
    Cin, Cout = conv_w.shape[0], conv_w.shape[1]
    HW = H * W
    M = np.zeros((Cin * HW, Cout * HW), dtype=np.float32)
    for i in range(H):
        for j in range(W):
            for h in range(max(0, i - PAD), min(H, i + PAD + 1)):
                for w in range(max(0, j - PAD), min(W, j + PAD + 1)):
                    kh, kw = h - i + PAD, w - j + PAD
                    # block of shape (Cin, Cout): rows ci*HW + i*W + j,
                    #                             cols co*HW + h*W + w
                    M[i * W + j::HW, h * W + w::HW] += conv_w[:, :, kh, kw]
    # bf16 storage: halves the dominant HBM->VMEM transfer of the kernel.
    return jnp.asarray(M, dtype=jnp.bfloat16)


def prepare_proj_params(fc_w, fc_b, conv_w, *, coef, z3_ngf):
    """Do once at module init: transpose FC weight and build the conv matrix."""
    # FC weight kept f32: only ~33 KiB (negligible bytes) and keeps the first
    # layer numerically exact; all the byte savings are in conv_mat.
    fc_w_t = jnp.asarray(fc_w, dtype=jnp.float32).T              # (Z, F)
    fc_b_row = jnp.asarray(fc_b, dtype=jnp.float32)[None, :]     # (1, F)
    conv_mat = _build_convT_matrix(conv_w, z3_ngf, z3_ngf)       # (F, Cout*H*W) bf16
    return fc_w_t, fc_b_row, conv_mat


# ---------------------------------------------------------------------------
# Forward: fused pallas_call (+ free metadata reshape to NCHW)
# ---------------------------------------------------------------------------
@partial(jax.jit, static_argnames=("coef", "z3_ngf", "batch_block"))
def proj_forward(z, fc_w_t, fc_b_row, conv_mat, *, coef, z3_ngf, batch_block=128):
    B, Z = z.shape
    Cout = z3_ngf * coef
    H = W = z3_ngf
    N = Cout * H * W
    F = fc_w_t.shape[1]
    vmem = pltpu.MemorySpace.VMEM

    if B <= batch_block:
        # Small batch: gridless, fully VMEM-resident single call (single TC,
        # no per-step overhead -- preferred on v5e/v6e).
        y = pl.pallas_call(
            proj_kernel,
            out_shape=jax.ShapeDtypeStruct((B, N), jnp.float32),
            in_specs=[pl.BlockSpec(memory_space=vmem)] * 4,
            out_specs=pl.BlockSpec(memory_space=vmem),
        )(z, fc_w_t, fc_b_row, conv_mat)
    else:
        # Large batch: tile the rows.  conv_mat's index_map is constant, so M
        # is DMA'd once and stays VMEM-resident across all batch tiles; the
        # batch axis is "parallel" (megacore-shardable).
        Bp = pl.cdiv(B, batch_block) * batch_block
        if Bp != B:
            z = jnp.pad(z, ((0, Bp - B), (0, 0)))
        y = pl.pallas_call(
            proj_kernel,
            out_shape=jax.ShapeDtypeStruct((Bp, N), jnp.float32),
            grid=(Bp // batch_block,),
            in_specs=[
                pl.BlockSpec((batch_block, Z), lambda i: (i, 0)),
                pl.BlockSpec((Z, F), lambda i: (0, 0)),
                pl.BlockSpec((1, F), lambda i: (0, 0)),
                pl.BlockSpec((F, N), lambda i: (0, 0)),   # constant: M resident
            ],
            out_specs=pl.BlockSpec((batch_block, N), lambda i: (i, 0)),
            compiler_params=pltpu.CompilerParams(
                dimension_semantics=("parallel",)),
        )(z, fc_w_t, fc_b_row, conv_mat)
        y = y[:B]

    # columns already in (co, h, w) order -> reshape is a free metadata op
    return y.reshape(B, Cout, H, W)


# ---------------------------------------------------------------------------
# Pure-JAX f32 reference for verification (PyTorch semantics, NCHW output)
# ---------------------------------------------------------------------------
def reference(z, fc_w, fc_b, conv_w, *, coef, z3_ngf):
    B = z.shape[0]
    h = jnp.maximum(z @ fc_w.T + fc_b, 0.0)
    x = h.reshape(B, coef, z3_ngf, z3_ngf)
    x_nhwc = jnp.transpose(x, (0, 2, 3, 1))
    # ConvT(stride=1,pad=2) == regular conv with spatially-flipped, in/out-swapped weight
    w_eff = jnp.transpose(jnp.flip(conv_w, axis=(2, 3)), (2, 3, 0, 1))
    y = lax.conv_general_dilated(
        x_nhwc, w_eff, window_strides=(1, 1),
        padding=((PAD, PAD), (PAD, PAD)),
        dimension_numbers=("NHWC", "HWIO", "NHWC"))
    y = jnp.maximum(y, 0.0)
    return jnp.transpose(y, (0, 3, 1, 2))


if __name__ == "__main__":
    # opt: z3_size=32, z3_ngf=8, coef=4 ; batch=2
    coef, z3_ngf, z3_size, B = 4, 8, 32, 2
    F = coef * z3_ngf * z3_ngf   # 256

    key = jax.random.PRNGKey(0)
    k1, k2, k3, k4 = jax.random.split(key, 4)
    fc_w = jax.random.normal(k1, (F, z3_size), dtype=jnp.float32) / np.sqrt(z3_size)
    fc_b = jax.random.normal(k2, (F,), dtype=jnp.float32) * 0.02
    conv_w = jax.random.normal(k3, (coef, z3_ngf * coef, K, K), dtype=jnp.float32) * 0.05
    z = jax.random.normal(k4, (B, z3_size), dtype=jnp.float32)

    # init-time parameter transforms (done once)
    fc_w_t, fc_b_row, conv_mat = prepare_proj_params(
        fc_w, fc_b, conv_w, coef=coef, z3_ngf=z3_ngf)

    # --- small-batch (gridless) path ---
    out = proj_forward(z, fc_w_t, fc_b_row, conv_mat, coef=coef, z3_ngf=z3_ngf)
    out = jax.block_until_ready(out)
    ref = reference(z, fc_w, fc_b, conv_w, coef=coef, z3_ngf=z3_ngf)
    assert out.shape == (B, z3_ngf * coef, z3_ngf, z3_ngf), out.shape
    # bf16 conv_mat over a depth-256 contraction -> relaxed tolerance vs f32 ref
    np.testing.assert_allclose(np.asarray(out), np.asarray(ref), rtol=2e-2, atol=2e-2)

    # --- batch-tiled path (M DMA'd once, resident across tiles; ragged B) ---
    B2 = 130
    z2 = jax.random.normal(jax.random.PRNGKey(1), (B2, z3_size), dtype=jnp.float32)
    out2 = proj_forward(z2, fc_w_t, fc_b_row, conv_mat, coef=coef, z3_ngf=z3_ngf)
    out2 = jax.block_until_ready(out2)
    ref2 = reference(z2, fc_w, fc_b, conv_w, coef=coef, z3_ngf=z3_ngf)
    assert out2.shape == (B2, z3_ngf * coef, z3_ngf, z3_ngf), out2.shape
    np.testing.assert_allclose(np.asarray(out2), np.asarray(ref2), rtol=2e-2, atol=2e-2)

    print("KERNEL_OK")
</pallas_src>

<mosaic_0001>
module attributes {stable_mosaic.version = 11 : i64} {
  func.func @proj_kernel(%arg0: memref<2x32xf32, #tpu.memory_space<vmem>>, %arg1: memref<32x256xf32, #tpu.memory_space<vmem>>, %arg2: memref<1x256xf32, #tpu.memory_space<vmem>>, %arg3: memref<256x2048xbf16, #tpu.memory_space<vmem>>, %arg4: memref<2x2048xf32, #tpu.memory_space<vmem>>) attributes {dimension_semantics = [], scalar_prefetch = 0 : i64, scratch_operands = 0 : i64, tpu.core_type = #tpu.core_type<tc>} {
    %c0 = arith.constant 0 : index
    %c0_0 = arith.constant 0 : index
    %0 = vector.load %arg0[%c0, %c0_0] : memref<2x32xf32, #tpu.memory_space<vmem>>, vector<2x32xf32>
    %c0_1 = arith.constant 0 : index
    %c0_2 = arith.constant 0 : index
    %1 = vector.load %arg1[%c0_1, %c0_2] : memref<32x256xf32, #tpu.memory_space<vmem>>, vector<32x256xf32>
    %cst = arith.constant dense<0.000000e+00> : vector<2x256xf32>
    %2 = tpu.matmul %0, %1, %cst {dimension_numbers = #tpu.dot_dimension_numbers<[1], [0], [0], [1], [0, 0, 1, 1], [], []>} : vector<2x32xf32>, vector<32x256xf32>, vector<2x256xf32> -> vector<2x256xf32>
    %c0_3 = arith.constant 0 : index
    %c0_4 = arith.constant 0 : index
    %3 = vector.load %arg2[%c0_3, %c0_4] : memref<1x256xf32, #tpu.memory_space<vmem>>, vector<1x256xf32>
    %4 = vector.broadcast %3 : vector<1x256xf32> to vector<2x256xf32>
    %5 = arith.addf %2, %4 : vector<2x256xf32>
    %cst_5 = arith.constant 0.000000e+00 : f32
    %6 = vector.broadcast %cst_5 : f32 to vector<2x256xf32>
    %7 = arith.maximumf %5, %6 : vector<2x256xf32>
    %8 = arith.truncf %7 : vector<2x256xf32> to vector<2x256xbf16>
    %c0_6 = arith.constant 0 : index
    %c0_7 = arith.constant 0 : index
    %9 = vector.load %arg3[%c0_6, %c0_7] : memref<256x2048xbf16, #tpu.memory_space<vmem>>, vector<256x2048xbf16>
    %cst_8 = arith.constant dense<0.000000e+00> : vector<2x2048xf32>
    %10 = tpu.matmul %8, %9, %cst_8 {dimension_numbers = #tpu.dot_dimension_numbers<[1], [0], [0], [1], [0, 0, 1, 1], [], []>} : vector<2x256xbf16>, vector<256x2048xbf16>, vector<2x2048xf32> -> vector<2x2048xf32>
    %cst_9 = arith.constant 0.000000e+00 : f32
    %11 = vector.broadcast %cst_9 : f32 to vector<2x2048xf32>
    %12 = arith.maximumf %10, %11 : vector<2x2048xf32>
    %c0_10 = arith.constant 0 : index
    %c0_11 = arith.constant 0 : index
    %13 = vector.load %arg4[%c0_10, %c0_11] : memref<2x2048xf32, #tpu.memory_space<vmem>>, vector<2x2048xf32>
    tpu.vector_store %arg4[%c0_10, %c0_11], %12 {strides = array<i32>} : memref<2x2048xf32, #tpu.memory_space<vmem>>, vector<2x2048xf32>,
    return
  }
}

</mosaic_0001>

<llo_original>
// kernel: proj_forward.1
$region0: #{proj_forward.1}
  #allocation0 [shape = 'u32[]', space=smem, size = 0x4, offset = 0x4, fixed_abs, tag = 'smem constant byte address 0x4 - core index']
  #allocation1 [shape = 'u32[144,128]{1,0:T(1,128)}', space=vmem, size = 0x12000, scoped, tag = 'internal scratch']
  %s0 = inlined_call_operand.hbm [shape: f32[2,32], index: 0, kind: input, shape index: {}]
  %s1 = inlined_call_operand.hbm [shape: f32[32,256], index: 1, kind: input, shape index: {}]
  %s2 = inlined_call_operand.vmem [shape: f32[1,256], index: 2, kind: input, shape index: {}]
  %s3 = inlined_call_operand.hbm [shape: bf16[256,2048], index: 3, kind: input, shape index: {}]
  %s4 = inlined_call_operand.vmem [shape: f32[2,2048], index: 4, kind: output, shape index: {}]
  %s5 = sld [smem:[#allocation0]]
  $region38: #{proj_forward.1} parent=0
    _
  %s7 = ssub.s32 1, %s5
  %s8 = scalar_select 0, %s7, %s5
  $region1: #{proj_forward.1} parent=0
    #allocation2 [shape = 'u8[1024]{0}', space=vmem, size = 0x400, scoped, tag = 'input window, operand 0, single buffered']
    #allocation3 [shape = 's32[1]{0}', space=sflag, size = 0x4, scoped, tag = 'scoped memory for proj_forward.1']
    #allocation4 [shape = 'u8[32768]{0}', space=vmem, size = 0x8000, scoped, tag = 'input window, operand 1, single buffered']
    #allocation5 [shape = 's32[1]{0}', space=sflag, size = 0x4, scoped, tag = 'scoped memory for proj_forward.1']
    #allocation6 [shape = 'u8[1048576]{0}', space=vmem, size = 0x100000, scoped, tag = 'input window, operand 3, single buffered']
    %9 = vsyncpa [#allocation3], 0
    %10 = vsyncpa [#allocation5], 0
    // Predicated region
    $region2: #{proj_forward.1} parent=1 // pred_check
      _
    $region3: #{proj_forward.1} parent=1 // pred_check_branch
      %12 = sbr.rel (0) target = $region5
    $region4: #{proj_forward.1} parent=1 // pred_region
      %s14 = ssub.s32 32, 32
      %15 = vsyncadd [#allocation3], %s14
      %s17 = sshll.u32 [#allocation2], 4
      %s18 = int_to_ptr.vmem [resolvable:$true] %s17
      %20 = dma.hbm_to_vmem [thread:$0]  %s0, 32, %s18, [#allocation3]
    $region5: #{proj_forward.1} parent=1 // pred_fallthru
      _
    // Predicated region
    $region6: #{proj_forward.1} parent=1 // pred_check
      _
    $region7: #{proj_forward.1} parent=1 // pred_check_branch
      %22 = sbr.rel (0) target = $region9
    $region8: #{proj_forward.1} parent=1 // pred_region
      %s24 = ssub.s32 1024, 1024
      %25 = vsyncadd [#allocation5], %s24
      %s26 = sshll.u32 [#allocation4], 4
      %s27 = int_to_ptr.vmem [resolvable:$true] %s26
      %32 = dma.hbm_to_vmem [thread:$0]  %s1, 1024, %s27, [#allocation5], 256, 256, 16
    $region9: #{proj_forward.1} parent=1 // pred_fallthru
      _
    // Predicated region
    $region10: #{proj_forward.1} parent=1 // pred_check
      _
    $region11: #{proj_forward.1} parent=1 // pred_check_branch
      %34 = sbr.rel (0) target = $region13
    $region12: #{proj_forward.1} parent=1 // pred_region
      _
    $region13: #{proj_forward.1} parent=1 // pred_fallthru
      _
    // Predicated region
    $region14: #{proj_forward.1} parent=1 // pred_check
      _
    $region15: #{proj_forward.1} parent=1 // pred_check_branch
      %36 = sbr.rel (0) target = $region17
    $region16: #{proj_forward.1} parent=1 // pred_region
      %s38 = ssub.s32 32768, 32768
      %39 = vsyncadd [#allocation5], %s38
      %s40 = sshll.u32 [#allocation6], 4
      %s41 = int_to_ptr.vmem [resolvable:$true] %s40
      %46 = dma.hbm_to_vmem [thread:$0]  %s3, 32768, %s41, [#allocation5], 1024, 1024, 64
    $region17: #{proj_forward.1} parent=1 // pred_fallthru
      _
    // Predicated region
    $region18: #{proj_forward.1} parent=1 // pred_check
      _
    $region19: #{proj_forward.1} parent=1 // pred_check_branch
      %48 = sbr.rel (0) target = $region21
    $region20: #{proj_forward.1} parent=1 // pred_region
      %49 = dma.done [#allocation3], 32
    $region21: #{proj_forward.1} parent=1 // pred_fallthru
      _
    // Predicated region
    $region22: #{proj_forward.1} parent=1 // pred_check
      _
    $region23: #{proj_forward.1} parent=1 // pred_check_branch
      %51 = sbr.rel (0) target = $region25
    $region24: #{proj_forward.1} parent=1 // pred_region
      %52 = dma.done [#allocation5], 1024
    $region25: #{proj_forward.1} parent=1 // pred_fallthru
      _
    // Predicated region
    $region26: #{proj_forward.1} parent=1 // pred_check
      _
    $region27: #{proj_forward.1} parent=1 // pred_check_branch
      %54 = sbr.rel (0) target = $region29
    $region28: #{proj_forward.1} parent=1 // pred_region
      %55 = dma.done [#allocation5], 32768
    $region29: #{proj_forward.1} parent=1 // pred_fallthru
      _
    %v56 = vld [vmem:[#allocation2] sm:$0x3]
    %v57 = vld [vmem:[#allocation4] sm:$0xff]
    %v58 = vld [vmem:[#allocation4 + $0x8] sm:$0xff]
    %v59 = vld [vmem:[#allocation4 + $0x10] sm:$0xff]
    %v60 = vld [vmem:[#allocation4 + $0x18] sm:$0xff]
    %v61 = vld [vmem:[#allocation4 + $0x20] sm:$0xff]
    %v62 = vld [vmem:[#allocation4 + $0x28] sm:$0xff]
    %v63 = vld [vmem:[#allocation4 + $0x30] sm:$0xff]
    %v64 = vld [vmem:[#allocation4 + $0x38] sm:$0xff]
    %v65 = vld [vmem:[%s2] sm:$0x3]
    %v67 = vlaneseq
    %v68 = vshrl.u32 %v67, 7
    %v69 = vsub.s32 0, %v68
    %v70 = vrot.slane %v65, %v69
    %v71 = vlaneseq
    %v72 = vshrl.u32 %v71, 7
    %v73 = vsub.s32 1, %v72
    %v74 = vrot.slane %v65, %v73
    %vm77 = vcmask 261120
    %v79 = vsel %vm77, %v56, 0
    %81 = vmatprep.subr.mxu0 %v58
    %82 = vmatpush1.msra.mxu0 %v57
    %83 = vmatprep.subr.mxu0 %v60
    %84 = vmatpush1.msra.mxu0 %v59
    %85 = vmatprep.subr.mxu0 %v62
    %86 = vmatpush1.msra.mxu0 %v61
    %87 = vmatprep.subr.mxu0 %v64
    %88 = vmatpush1.msra.mxu0 %v63
    %89 = vmatprep.subr.mxu0 0.0
    %90 = vmatpush1.msra.mxu0 0.0
    %91 = vmatprep.subr.mxu0 0.0
    %92 = vmatpush1.msra.mxu0 0.0
    %93 = vmatprep.subr.mxu0 0.0
    %94 = vmatpush1.msra.mxu0 0.0
    %95 = vmatprep.subr.mxu0 0.0
    %96 = vmatpush1.msra.mxu0 0.0
    %97 = vmatprep.subr.mxu0 0.0
    %98 = vmatpush1.msra.mxu0 0.0
    %99 = vmatprep.subr.mxu0 0.0
    %100 = vmatpush1.msra.mxu0 0.0
    %101 = vmatprep.subr.mxu0 0.0
    %102 = vmatpush1.msra.mxu0 0.0
    %103 = vmatprep.subr.mxu0 0.0
    %104 = vmatpush1.msra.mxu0 0.0
    %105 = vmatprep.subr.mxu0 0.0
    %106 = vmatpush1.msra.mxu0 0.0
    %107 = vmatprep.subr.mxu0 0.0
    %108 = vmatpush1.msra.mxu0 0.0
    %109 = vmatprep.subr.mxu0 0.0
    %110 = vmatpush1.msra.mxu0 0.0
    %111 = vmatprep.subr.mxu0 0.0
    %112 = vmatpush1.msra.mxu0 0.0
    %113 = vmatprep.subr.mxu0 0.0
    %114 = vmatpush1.msra.mxu0 0.0
    %115 = vmatprep.subr.mxu0 0.0
    %116 = vmatpush1.msra.mxu0 0.0
    %117 = vmatprep.subr.mxu0 0.0
    %118 = vmatpush1.msra.mxu0 0.0
    %119 = vmatprep.subr.mxu0 0.0
    %120 = vmatpush1.msra.mxu0 0.0
    %121 = vmatprep.subr.mxu0 0.0
    %122 = vmatpush1.msra.mxu0 0.0
    %123 = vmatprep.subr.mxu0 0.0
    %124 = vmatpush1.msra.mxu0 0.0
    %125 = vmatprep.subr.mxu0 0.0
    %126 = vmatpush1.msra.mxu0 0.0
    %127 = vmatprep.subr.mxu0 0.0
    %128 = vmatpush1.msra.mxu0 0.0
    %129 = vmatprep.subr.mxu0 0.0
    %130 = vmatpush1.msra.mxu0 0.0
    %131 = vmatprep.subr.mxu0 0.0
    %132 = vmatpush1.msra.mxu0 0.0
    %133 = vmatprep.subr.mxu0 0.0
    %134 = vmatpush1.msra.mxu0 0.0
    %135 = vmatprep.subr.mxu0 0.0
    %136 = vmatpush1.msra.mxu0 0.0
    %137 = vmatprep.subr.mxu0 0.0
    %138 = vmatpush1.msra.mxu0 0.0
    %139 = vmatprep.subr.mxu0 0.0
    %140 = vmatpush1.msra.mxu0 0.0
    %141 = vmatprep.subr.mxu0 0.0
    %142 = vmatpush1.msra.mxu0 0.0
    %143 = vmatprep.subr.mxu0 0.0
    %144 = vmatpush1.msra.mxu0 0.0
    %145 = vmatprep.mubr.f32.mxu0 0.0
    %146 = vmatmul.mubr.f32.gmra.mrb[0].mxu0 %v79
    %v147 = vpop.f32.mrb[0].mxu0
    %v148 = vadd.f32 %v70, %v147
    %v149 = vpop.f32.mrb[0].mxu0
    %v150 = vadd.f32 %v74, %v149
    %151 = vdwg.mxu0
    %v152 = vmax.f32 %v148, 0.0
    %v153 = vmax.f32 %v150, 0.0
    %v154 = vpack.c.bf16 %v152, %v152
    %v155 = vpack.c.bf16 %v153, %v153
    %v156 = vld [vmem:[#allocation6] sm:$0xff]
    %v157 = vld [vmem:[#allocation6 + $0x8] sm:$0xff]
    %v158 = vld [vmem:[#allocation6 + $0x10] sm:$0xff]
    %v159 = vld [vmem:[#allocation6 + $0x18] sm:$0xff]
    %v160 = vld [vmem:[#allocation6 + $0x20] sm:$0xff]
    %v161 = vld [vmem:[#allocation6 + $0x28] sm:$0xff]
    %v162 = vld [vmem:[#allocation6 + $0x30] sm:$0xff]
    %v163 = vld [vmem:[#allocation6 + $0x38] sm:$0xff]
    %v164 = vld [vmem:[#allocation6 + $0x40] sm:$0xff]
    %v165 = vld [vmem:[#allocation6 + $0x48] sm:$0xff]
    %v166 = vld [vmem:[#allocation6 + $0x50] sm:$0xff]
    %v167 = vld [vmem:[#allocation6 + $0x58] sm:$0xff]
    %v168 = vld [vmem:[#allocation6 + $0x60] sm:$0xff]
    %v169 = vld [vmem:[#allocation6 + $0x68] sm:$0xff]
    %v170 = vld [vmem:[#allocation6 + $0x70] sm:$0xff]
    %v171 = vld [vmem:[#allocation6 + $0x78] sm:$0xff]
    %v172 = vld [vmem:[#allocation6 + $0x80] sm:$0xff]
    %v173 = vld [vmem:[#allocation6 + $0x88] sm:$0xff]
    %v174 = vld [vmem:[#allocation6 + $0x90] sm:$0xff]
    %v175 = vld [vmem:[#allocation6 + $0x98] sm:$0xff]
    %v176 = vld [vmem:[#allocation6 + $0xa0] sm:$0xff]
    %v177 = vld [vmem:[#allocation6 + $0xa8] sm:$0xff]
    %v178 = vld [vmem:[#allocation6 + $0xb0] sm:$0xff]
    %v179 = vld [vmem:[#allocation6 + $0xb8] sm:$0xff]
    %v180 = vld [vmem:[#allocation6 + $0xc0] sm:$0xff]
    %v181 = vld [vmem:[#allocation6 + $0xc8] sm:$0xff]
    %v182 = vld [vmem:[#allocation6 + $0xd0] sm:$0xff]
    %v183 = vld [vmem:[#allocation6 + $0xd8] sm:$0xff]
    %v184 = vld [vmem:[#allocation6 + $0xe0] sm:$0xff]
    %v185 = vld [vmem:[#allocation6 + $0xe8] sm:$0xff]
    %v186 = vld [vmem:[#allocation6 + $0xf0] sm:$0xff]
    %v187 = vld [vmem:[#allocation6 + $0xf8] sm:$0xff]
    %v188 = vld [vmem:[#allocation6 + $0x100] sm:$0xff]
    %v189 = vld [vmem:[#allocation6 + $0x108] sm:$0xff]
    %v190 = vld [vmem:[#allocation6 + $0x110] sm:$0xff]
    %v191 = vld [vmem:[#allocation6 + $0x118] sm:$0xff]
    %v192 = vld [vmem:[#allocation6 + $0x120] sm:$0xff]
    %v193 = vld [vmem:[#allocation6 + $0x128] sm:$0xff]
    %v194 = vld [vmem:[#allocation6 + $0x130] sm:$0xff]
    %v195 = vld [vmem:[#allocation6 + $0x138] sm:$0xff]
    %v196 = vld [vmem:[#allocation6 + $0x140] sm:$0xff]
    %v197 = vld [vmem:[#allocation6 + $0x148] sm:$0xff]
    %v198 = vld [vmem:[#allocation6 + $0x150] sm:$0xff]
    %v199 = vld [vmem:[#allocation6 + $0x158] sm:$0xff]
    %v200 = vld [vmem:[#allocation6 + $0x160] sm:$0xff]
    %v201 = vld [vmem:[#allocation6 + $0x168] sm:$0xff]
    %v202 = vld [vmem:[#allocation6 + $0x170] sm:$0xff]
    %v203 = vld [vmem:[#allocation6 + $0x178] sm:$0xff]
    %v204 = vld [vmem:[#allocation6 + $0x180] sm:$0xff]
    %v205 = vld [vmem:[#allocation6 + $0x188] sm:$0xff]
    %v206 = vld [vmem:[#allocation6 + $0x190] sm:$0xff]
    %v207 = vld [vmem:[#allocation6 + $0x198] sm:$0xff]
    %v208 = vld [vmem:[#allocation6 + $0x1a0] sm:$0xff]
    %v209 = vld [vmem:[#allocation6 + $0x1a8] sm:$0xff]
    %v210 = vld [vmem:[#allocation6 + $0x1b0] sm:$0xff]
    %v211 = vld [vmem:[#allocation6 + $0x1b8] sm:$0xff]
    %v212 = vld [vmem:[#allocation6 + $0x1c0] sm:$0xff]
    %v213 = vld [vmem:[#allocation6 + $0x1c8] sm:$0xff]
    %v214 = vld [vmem:[#allocation6 + $0x1d0] sm:$0xff]
    %v215 = vld [vmem:[#allocation6 + $0x1d8] sm:$0xff]
    %v216 = vld [vmem:[#allocation6 + $0x1e0] sm:$0xff]
    %v217 = vld [vmem:[#allocation6 + $0x1e8] sm:$0xff]
    %v218 = vld [vmem:[#allocation6 + $0x1f0] sm:$0xff]
    %v219 = vld [vmem:[#allocation6 + $0x1f8] sm:$0xff]
    %v220 = vld [vmem:[#allocation6 + $0x200] sm:$0xff]
    %v221 = vld [vmem:[#allocation6 + $0x208] sm:$0xff]
    %v222 = vld [vmem:[#allocation6 + $0x210] sm:$0xff]
    %v223 = vld [vmem:[#allocation6 + $0x218] sm:$0xff]
    %v224 = vld [vmem:[#allocation6 + $0x220] sm:$0xff]
    %v225 = vld [vmem:[#allocation6 + $0x228] sm:$0xff]
    %v226 = vld [vmem:[#allocation6 + $0x230] sm:$0xff]
    %v227 = vld [vmem:[#allocation6 + $0x238] sm:$0xff]
    %v228 = vld [vmem:[#allocation6 + $0x240] sm:$0xff]
    %v229 = vld [vmem:[#allocation6 + $0x248] sm:$0xff]
    %v230 = vld [vmem:[#allocation6 + $0x250] sm:$0xff]
    %v231 = vld [vmem:[#allocation6 + $0x258] sm:$0xff]
    %v232 = vld [vmem:[#allocation6 + $0x260] sm:$0xff]
    %v233 = vld [vmem:[#allocation6 + $0x268] sm:$0xff]
    %v234 = vld [vmem:[#allocation6 + $0x270] sm:$0xff]
    %v235 = vld [vmem:[#allocation6 + $0x278] sm:$0xff]
    %v236 = vld [vmem:[#allocation6 + $0x280] sm:$0xff]
    %v237 = vld [vmem:[#allocation6 + $0x288] sm:$0xff]
    %v238 = vld [vmem:[#allocation6 + $0x290] sm:$0xff]
    %v239 = vld [vmem:[#allocation6 + $0x298] sm:$0xff]
    %v240 = vld [vmem:[#allocation6 + $0x2a0] sm:$0xff]
    %v241 = vld [vmem:[#allocation6 + $0x2a8] sm:$0xff]
    %v242 = vld [vmem:[#allocation6 + $0x2b0] sm:$0xff]
    %v243 = vld [vmem:[#allocation6 + $0x2b8] sm:$0xff]
    %v244 = vld [vmem:[#allocation6 + $0x2c0] sm:$0xff]
    %v245 = vld [vmem:[#allocation6 + $0x2c8] sm:$0xff]
    %v246 = vld [vmem:[#allocation6 + $0x2d0] sm:$0xff]
    %v247 = vld [vmem:[#allocation6 + $0x2d8] sm:$0xff]
    %v248 = vld [vmem:[#allocation6 + $0x2e0] sm:$0xff]
    %v249 = vld [vmem:[#allocation6 + $0x2e8] sm:$0xff]
    %v250 = vld [vmem:[#allocation6 + $0x2f0] sm:$0xff]
    %v251 = vld [vmem:[#allocation6 + $0x2f8] sm:$0xff]
    %v252 = vld [vmem:[#allocation6 + $0x300] sm:$0xff]
    %v253 = vld [vmem:[#allocation6 + $0x308] sm:$0xff]
    %v254 = vld [vmem:[#allocation6 + $0x310] sm:$0xff]
    %v255 = vld [vmem:[#allocation6 + $0x318] sm:$0xff]
    %v256 = vld [vmem:[#allocation6 + $0x320] sm:$0xff]
    %v257 = vld [vmem:[#allocation6 + $0x328] sm:$0xff]
    %v258 = vld [vmem:[#allocation6 + $0x330] sm:$0xff]
    %v259 = vld [vmem:[#allocation6 + $0x338] sm:$0xff]
    %v260 = vld [vmem:[#allocation6 + $0x340] sm:$0xff]
    %v261 = vld [vmem:[#allocation6 + $0x348] sm:$0xff]
    %v262 = vld [vmem:[#allocation6 + $0x350] sm:$0xff]
    %v263 = vld [vmem:[#allocation6 + $0x358] sm:$0xff]
    %v264 = vld [vmem:[#allocation6 + $0x360] sm:$0xff]
    %v265 = vld [vmem:[#allocation6 + $0x368] sm:$0xff]
    %v266 = vld [vmem:[#allocation6 + $0x370] sm:$0xff]
    %v267 = vld [vmem:[#allocation6 + $0x378] sm:$0xff]
    %v268 = vld [vmem:[#allocation6 + $0x380] sm:$0xff]
    %v269 = vld [vmem:[#allocation6 + $0x388] sm:$0xff]
    %v270 = vld [vmem:[#allocation6 + $0x390] sm:$0xff]
    %v271 = vld [vmem:[#allocation6 + $0x398] sm:$0xff]
    %v272 = vld [vmem:[#allocation6 + $0x3a0] sm:$0xff]
    %v273 = vld [vmem:[#allocation6 + $0x3a8] sm:$0xff]
    %v274 = vld [vmem:[#allocation6 + $0x3b0] sm:$0xff]
    %v275 = vld [vmem:[#allocation6 + $0x3b8] sm:$0xff]
    %v276 = vld [vmem:[#allocation6 + $0x3c0] sm:$0xff]
    %v277 = vld [vmem:[#allocation6 + $0x3c8] sm:$0xff]
    %v278 = vld [vmem:[#allocation6 + $0x3d0] sm:$0xff]
    %v279 = vld [vmem:[#allocation6 + $0x3d8] sm:$0xff]
    %v280 = vld [vmem:[#allocation6 + $0x3e0] sm:$0xff]
    %v281 = vld [vmem:[#allocation6 + $0x3e8] sm:$0xff]
    %v282 = vld [vmem:[#allocation6 + $0x3f0] sm:$0xff]
    %v283 = vld [vmem:[#allocation6 + $0x3f8] sm:$0xff]
    %v284 = vld [vmem:[#allocation6 + $0x400] sm:$0xff]
    %v285 = vld [vmem:[#allocation6 + $0x408] sm:$0xff]
    %v286 = vld [vmem:[#allocation6 + $0x410] sm:$0xff]
    %v287 = vld [vmem:[#allocation6 + $0x418] sm:$0xff]
    %v288 = vld [vmem:[#allocation6 + $0x420] sm:$0xff]
    %v289 = vld [vmem:[#allocation6 + $0x428] sm:$0xff]
    %v290 = vld [vmem:[#allocation6 + $0x430] sm:$0xff]
    %v291 = vld [vmem:[#allocation6 + $0x438] sm:$0xff]
    %v292 = vld [vmem:[#allocation6 + $0x440] sm:$0xff]
    %v293 = vld [vmem:[#allocation6 + $0x448] sm:$0xff]
    %v294 = vld [vmem:[#allocation6 + $0x450] sm:$0xff]
    %v295 = vld [vmem:[#allocation6 + $0x458] sm:$0xff]
    %v296 = vld [vmem:[#allocation6 + $0x460] sm:$0xff]
    %v297 = vld [vmem:[#allocation6 + $0x468] sm:$0xff]
    %v298 = vld [vmem:[#allocation6 + $0x470] sm:$0xff]
    %v299 = vld [vmem:[#allocation6 + $0x478] sm:$0xff]
    %v300 = vld [vmem:[#allocation6 + $0x480] sm:$0xff]
    %v301 = vld [vmem:[#allocation6 + $0x488] sm:$0xff]
    %v302 = vld [vmem:[#allocation6 + $0x490] sm:$0xff]
    %v303 = vld [vmem:[#allocation6 + $0x498] sm:$0xff]
    %v304 = vld [vmem:[#allocation6 + $0x4a0] sm:$0xff]
    %v305 = vld [vmem:[#allocation6 + $0x4a8] sm:$0xff]
    %v306 = vld [vmem:[#allocation6 + $0x4b0] sm:$0xff]
    %v307 = vld [vmem:[#allocation6 + $0x4b8] sm:$0xff]
    %v308 = vld [vmem:[#allocation6 + $0x4c0] sm:$0xff]
    %v309 = vld [vmem:[#allocation6 + $0x4c8] sm:$0xff]
    %v310 = vld [vmem:[#allocation6 + $0x4d0] sm:$0xff]
    %v311 = vld [vmem:[#allocation6 + $0x4d8] sm:$0xff]
    %v312 = vld [vmem:[#allocation6 + $0x4e0] sm:$0xff]
    %v313 = vld [vmem:[#allocation6 + $0x4e8] sm:$0xff]
    %v314 = vld [vmem:[#allocation6 + $0x4f0] sm:$0xff]
    %v315 = vld [vmem:[#allocation6 + $0x4f8] sm:$0xff]
    %v316 = vld [vmem:[#allocation6 + $0x500] sm:$0xff]
    %v317 = vld [vmem:[#allocation6 + $0x508] sm:$0xff]
    %v318 = vld [vmem:[#allocation6 + $0x510] sm:$0xff]
    %v319 = vld [vmem:[#allocation6 + $0x518] sm:$0xff]
    %v320 = vld [vmem:[#allocation6 + $0x520] sm:$0xff]
    %v321 = vld [vmem:[#allocation6 + $0x528] sm:$0xff]
    %v322 = vld [vmem:[#allocation6 + $0x530] sm:$0xff]
    %v323 = vld [vmem:[#allocation6 + $0x538] sm:$0xff]
    %v324 = vld [vmem:[#allocation6 + $0x540] sm:$0xff]
    %v325 = vld [vmem:[#allocation6 + $0x548] sm:$0xff]
    %v326 = vld [vmem:[#allocation6 + $0x550] sm:$0xff]
    %v327 = vld [vmem:[#allocation6 + $0x558] sm:$0xff]
    %v328 = vld [vmem:[#allocation6 + $0x560] sm:$0xff]
    %v329 = vld [vmem:[#allocation6 + $0x568] sm:$0xff]
    %v330 = vld [vmem:[#allocation6 + $0x570] sm:$0xff]
    %v331 = vld [vmem:[#allocation6 + $0x578] sm:$0xff]
    %v332 = vld [vmem:[#allocation6 + $0x580] sm:$0xff]
    %v333 = vld [vmem:[#allocation6 + $0x588] sm:$0xff]
    %v334 = vld [vmem:[#allocation6 + $0x590] sm:$0xff]
    %v335 = vld [vmem:[#allocation6 + $0x598] sm:$0xff]
    %v336 = vld [vmem:[#allocation6 + $0x5a0] sm:$0xff]
    %v337 = vld [vmem:[#allocation6 + $0x5a8] sm:$0xff]
    %v338 = vld [vmem:[#allocation6 + $0x5b0] sm:$0xff]
    %v339 = vld [vmem:[#allocation6 + $0x5b8] sm:$0xff]
    %v340 = vld [vmem:[#allocation6 + $0x5c0] sm:$0xff]
    %v341 = vld [vmem:[#allocation6 + $0x5c8] sm:$0xff]
    %v342 = vld [vmem:[#allocation6 + $0x5d0] sm:$0xff]
    %v343 = vld [vmem:[#allocation6 + $0x5d8] sm:$0xff]
    %v344 = vld [vmem:[#allocation6 + $0x5e0] sm:$0xff]
    %v345 = vld [vmem:[#allocation6 + $0x5e8] sm:$0xff]
    %v346 = vld [vmem:[#allocation6 + $0x5f0] sm:$0xff]
    %v347 = vld [vmem:[#allocation6 + $0x5f8] sm:$0xff]
    %v348 = vld [vmem:[#allocation6 + $0x600] sm:$0xff]
    %v349 = vld [vmem:[#allocation6 + $0x608] sm:$0xff]
    %v350 = vld [vmem:[#allocation6 + $0x610] sm:$0xff]
    %v351 = vld [vmem:[#allocation6 + $0x618] sm:$0xff]
    %v352 = vld [vmem:[#allocation6 + $0x620] sm:$0xff]
    %v353 = vld [vmem:[#allocation6 + $0x628] sm:$0xff]
    %v354 = vld [vmem:[#allocation6 + $0x630] sm:$0xff]
    %v355 = vld [vmem:[#allocation6 + $0x638] sm:$0xff]
    %v356 = vld [vmem:[#allocation6 + $0x640] sm:$0xff]
    %v357 = vld [vmem:[#allocation6 + $0x648] sm:$0xff]
    %v358 = vld [vmem:[#allocation6 + $0x650] sm:$0xff]
    %v359 = vld [vmem:[#allocation6 + $0x658] sm:$0xff]
    %v360 = vld [vmem:[#allocation6 + $0x660] sm:$0xff]
    %v361 = vld [vmem:[#allocation6 + $0x668] sm:$0xff]
    %v362 = vld [vmem:[#allocation6 + $0x670] sm:$0xff]
    %v363 = vld [vmem:[#allocation6 + $0x678] sm:$0xff]
    %v364 = vld [vmem:[#allocation6 + $0x680] sm:$0xff]
    %v365 = vld [vmem:[#allocation6 + $0x688] sm:$0xff]
    %v366 = vld [vmem:[#allocation6 + $0x690] sm:$0xff]
    %v367 = vld [vmem:[#allocation6 + $0x698] sm:$0xff]
    %v368 = vld [vmem:[#allocation6 + $0x6a0] sm:$0xff]
    %v369 = vld [vmem:[#allocation6 + $0x6a8] sm:$0xff]
    %v370 = vld [vmem:[#allocation6 + $0x6b0] sm:$0xff]
    %v371 = vld [vmem:[#allocation6 + $0x6b8] sm:$0xff]
    %v372 = vld [vmem:[#allocation6 + $0x6c0] sm:$0xff]
    %v373 = vld [vmem:[#allocation6 + $0x6c8] sm:$0xff]
    %v374 = vld [vmem:[#allocation6 + $0x6d0] sm:$0xff]
    %v375 = vld [vmem:[#allocation6 + $0x6d8] sm:$0xff]
    %v376 = vld [vmem:[#allocation6 + $0x6e0] sm:$0xff]
    %v377 = vld [vmem:[#allocation6 + $0x6e8] sm:$0xff]
    %v378 = vld [vmem:[#allocation6 + $0x6f0] sm:$0xff]
    %v379 = vld [vmem:[#allocation6 + $0x6f8] sm:$0xff]
    %v380 = vld [vmem:[#allocation6 + $0x700] sm:$0xff]
    %v381 = vld [vmem:[#allocation6 + $0x708] sm:$0xff]
    %v382 = vld [vmem:[#allocation6 + $0x710] sm:$0xff]
    %v383 = vld [vmem:[#allocation6 + $0x718] sm:$0xff]
    %v384 = vld [vmem:[#allocation6 + $0x720] sm:$0xff]
    %v385 = vld [vmem:[#allocation6 + $0x728] sm:$0xff]
    %v386 = vld [vmem:[#allocation6 + $0x730] sm:$0xff]
    %v387 = vld [vmem:[#allocation6 + $0x738] sm:$0xff]
    %v388 = vld [vmem:[#allocation6 + $0x740] sm:$0xff]
    %v389 = vld [vmem:[#allocation6 + $0x748] sm:$0xff]
    %v390 = vld [vmem:[#allocation6 + $0x750] sm:$0xff]
    %v391 = vld [vmem:[#allocation6 + $0x758] sm:$0xff]
    %v392 = vld [vmem:[#allocation6 + $0x760] sm:$0xff]
    %v393 = vld [vmem:[#allocation6 + $0x768] sm:$0xff]
    %v394 = vld [vmem:[#allocation6 + $0x770] sm:$0xff]
    %v395 = vld [vmem:[#allocation6 + $0x778] sm:$0xff]
    %v396 = vld [vmem:[#allocation6 + $0x780] sm:$0xff]
    %v397 = vld [vmem:[#allocation6 + $0x788] sm:$0xff]
    %v398 = vld [vmem:[#allocation6 + $0x790] sm:$0xff]
    %v399 = vld [vmem:[#allocation6 + $0x798] sm:$0xff]
    %v400 = vld [vmem:[#allocation6 + $0x7a0] sm:$0xff]
    %v401 = vld [vmem:[#allocation6 + $0x7a8] sm:$0xff]
    %v402 = vld [vmem:[#allocation6 + $0x7b0] sm:$0xff]
    %v403 = vld [vmem:[#allocation6 + $0x7b8] sm:$0xff]
    %v404 = vld [vmem:[#allocation6 + $0x7c0] sm:$0xff]
    %v405 = vld [vmem:[#allocation6 + $0x7c8] sm:$0xff]
    %v406 = vld [vmem:[#allocation6 + $0x7d0] sm:$0xff]
    %v407 = vld [vmem:[#allocation6 + $0x7d8] sm:$0xff]
    %v408 = vld [vmem:[#allocation6 + $0x7e0] sm:$0xff]
    %v409 = vld [vmem:[#allocation6 + $0x7e8] sm:$0xff]
    %v410 = vld [vmem:[#allocation6 + $0x7f0] sm:$0xff]
    %v411 = vld [vmem:[#allocation6 + $0x7f8] sm:$0xff]
    %v668 = vunpack.c.l.b16 %v156
    %v669 = vunpack.c.h.b16 %v156
    %v670 = vunpack.c.l.b16 %v157
    %v671 = vunpack.c.h.b16 %v157
    %v672 = vunpack.c.l.b16 %v158
    %v673 = vunpack.c.h.b16 %v158
    %v674 = vunpack.c.l.b16 %v159
    %v675 = vunpack.c.h.b16 %v159
    %v676 = vunpack.c.l.b16 %v160
    %v677 = vunpack.c.h.b16 %v160
    %v678 = vunpack.c.l.b16 %v161
    %v679 = vunpack.c.h.b16 %v161
    %v680 = vunpack.c.l.b16 %v162
    %v681 = vunpack.c.h.b16 %v162
    %v682 = vunpack.c.l.b16 %v163
    %v683 = vunpack.c.h.b16 %v163
    %v684 = vunpack.c.l.b16 %v164
    %v685 = vunpack.c.h.b16 %v164
    %v686 = vunpack.c.l.b16 %v165
    %v687 = vunpack.c.h.b16 %v165
    %v688 = vunpack.c.l.b16 %v166
    %v689 = vunpack.c.h.b16 %v166
    %v690 = vunpack.c.l.b16 %v167
    %v691 = vunpack.c.h.b16 %v167
    %v692 = vunpack.c.l.b16 %v168
    %v693 = vunpack.c.h.b16 %v168
    %v694 = vunpack.c.l.b16 %v169
    %v695 = vunpack.c.h.b16 %v169
    %v696 = vunpack.c.l.b16 %v170
    %v697 = vunpack.c.h.b16 %v170
    %v698 = vunpack.c.l.b16 %v171
    %v699 = vunpack.c.h.b16 %v171
    %v700 = vunpack.c.l.b16 %v172
    %v701 = vunpack.c.h.b16 %v172
    %v702 = vunpack.c.l.b16 %v173
    %v703 = vunpack.c.h.b16 %v173
    %v704 = vunpack.c.l.b16 %v174
    %v705 = vunpack.c.h.b16 %v174
    %v706 = vunpack.c.l.b16 %v175
    %v707 = vunpack.c.h.b16 %v175
    %v708 = vunpack.c.l.b16 %v176
    %v709 = vunpack.c.h.b16 %v176
    %v710 = vunpack.c.l.b16 %v177
    %v711 = vunpack.c.h.b16 %v177
    %v712 = vunpack.c.l.b16 %v178
    %v713 = vunpack.c.h.b16 %v178
    %v714 = vunpack.c.l.b16 %v179
    %v715 = vunpack.c.h.b16 %v179
    %v716 = vunpack.c.l.b16 %v180
    %v717 = vunpack.c.h.b16 %v180
    %v718 = vunpack.c.l.b16 %v181
    %v719 = vunpack.c.h.b16 %v181
    %v720 = vunpack.c.l.b16 %v182
    %v721 = vunpack.c.h.b16 %v182
    %v722 = vunpack.c.l.b16 %v183
    %v723 = vunpack.c.h.b16 %v183
    %v724 = vunpack.c.l.b16 %v184
    %v725 = vunpack.c.h.b16 %v184
    %v726 = vunpack.c.l.b16 %v185
    %v727 = vunpack.c.h.b16 %v185
    %v728 = vunpack.c.l.b16 %v186
    %v729 = vunpack.c.h.b16 %v186
    %v730 = vunpack.c.l.b16 %v187
    %v731 = vunpack.c.h.b16 %v187
    %v732 = vunpack.c.l.b16 %v188
    %v733 = vunpack.c.h.b16 %v188
    %v734 = vunpack.c.l.b16 %v189
    %v735 = vunpack.c.h.b16 %v189
    %v736 = vunpack.c.l.b16 %v190
    %v737 = vunpack.c.h.b16 %v190
    %v738 = vunpack.c.l.b16 %v191
    %v739 = vunpack.c.h.b16 %v191
    %v740 = vunpack.c.l.b16 %v192
    %v741 = vunpack.c.h.b16 %v192
    %v742 = vunpack.c.l.b16 %v193
    %v743 = vunpack.c.h.b16 %v193
    %v744 = vunpack.c.l.b16 %v194
    %v745 = vunpack.c.h.b16 %v194
    %v746 = vunpack.c.l.b16 %v195
    %v747 = vunpack.c.h.b16 %v195
    %v748 = vunpack.c.l.b16 %v196
    %v749 = vunpack.c.h.b16 %v196
    %v750 = vunpack.c.l.b16 %v197
    %v751 = vunpack.c.h.b16 %v197
    %v752 = vunpack.c.l.b16 %v198
    %v753 = vunpack.c.h.b16 %v198
    %v754 = vunpack.c.l.b16 %v199
    %v755 = vunpack.c.h.b16 %v199
    %v756 = vunpack.c.l.b16 %v200
    %v757 = vunpack.c.h.b16 %v200
    %v758 = vunpack.c.l.b16 %v201
    %v759 = vunpack.c.h.b16 %v201
    %v760 = vunpack.c.l.b16 %v202
    %v761 = vunpack.c.h.b16 %v202
    %v762 = vunpack.c.l.b16 %v203
    %v763 = vunpack.c.h.b16 %v203
    %v764 = vunpack.c.l.b16 %v204
    %v765 = vunpack.c.h.b16 %v204
    %v766 = vunpack.c.l.b16 %v205
    %v767 = vunpack.c.h.b16 %v205
    %v768 = vunpack.c.l.b16 %v206
    %v769 = vunpack.c.h.b16 %v206
    %v770 = vunpack.c.l.b16 %v207
    %v771 = vunpack.c.h.b16 %v207
    %v772 = vunpack.c.l.b16 %v208
    %v773 = vunpack.c.h.b16 %v208
    %v774 = vunpack.c.l.b16 %v209
    %v775 = vunpack.c.h.b16 %v209
    %v776 = vunpack.c.l.b16 %v210
    %v777 = vunpack.c.h.b16 %v210
    %v778 = vunpack.c.l.b16 %v211
    %v779 = vunpack.c.h.b16 %v211
    %v780 = vunpack.c.l.b16 %v212
    %v781 = vunpack.c.h.b16 %v212
    %v782 = vunpack.c.l.b16 %v213
    %v783 = vunpack.c.h.b16 %v213
    %v784 = vunpack.c.l.b16 %v214
    %v785 = vunpack.c.h.b16 %v214
    %v786 = vunpack.c.l.b16 %v215
    %v787 = vunpack.c.h.b16 %v215
    %v788 = vunpack.c.l.b16 %v216
    %v789 = vunpack.c.h.b16 %v216
    %v790 = vunpack.c.l.b16 %v217
    %v791 = vunpack.c.h.b16 %v217
    %v792 = vunpack.c.l.b16 %v218
    %v793 = vunpack.c.h.b16 %v218
    %v794 = vunpack.c.l.b16 %v219
    %v795 = vunpack.c.h.b16 %v219
    %v796 = vunpack.c.l.b16 %v220
    %v797 = vunpack.c.h.b16 %v220
    %v798 = vunpack.c.l.b16 %v221
    %v799 = vunpack.c.h.b16 %v221
    %v800 = vunpack.c.l.b16 %v222
    %v801 = vunpack.c.h.b16 %v222
    %v802 = vunpack.c.l.b16 %v223
    %v803 = vunpack.c.h.b16 %v223
    %v804 = vunpack.c.l.b16 %v224
    %v805 = vunpack.c.h.b16 %v224
    %v806 = vunpack.c.l.b16 %v225
    %v807 = vunpack.c.h.b16 %v225
    %v808 = vunpack.c.l.b16 %v226
    %v809 = vunpack.c.h.b16 %v226
    %v810 = vunpack.c.l.b16 %v227
    %v811 = vunpack.c.h.b16 %v227
    %v812 = vunpack.c.l.b16 %v228
    %v813 = vunpack.c.h.b16 %v228
    %v814 = vunpack.c.l.b16 %v229
    %v815 = vunpack.c.h.b16 %v229
    %v816 = vunpack.c.l.b16 %v230
    %v817 = vunpack.c.h.b16 %v230
    %v818 = vunpack.c.l.b16 %v231
    %v819 = vunpack.c.h.b16 %v231
    %v820 = vunpack.c.l.b16 %v232
    %v821 = vunpack.c.h.b16 %v232
    %v822 = vunpack.c.l.b16 %v233
    %v823 = vunpack.c.h.b16 %v233
    %v824 = vunpack.c.l.b16 %v234
    %v825 = vunpack.c.h.b16 %v234
    %v826 = vunpack.c.l.b16 %v235
    %v827 = vunpack.c.h.b16 %v235
    %v828 = vunpack.c.l.b16 %v236
    %v829 = vunpack.c.h.b16 %v236
    %v830 = vunpack.c.l.b16 %v237
    %v831 = vunpack.c.h.b16 %v237
    %v832 = vunpack.c.l.b16 %v238
    %v833 = vunpack.c.h.b16 %v238
    %v834 = vunpack.c.l.b16 %v239
    %v835 = vunpack.c.h.b16 %v239
    %v836 = vunpack.c.l.b16 %v240
    %v837 = vunpack.c.h.b16 %v240
    %v838 = vunpack.c.l.b16 %v241
    %v839 = vunpack.c.h.b16 %v241
    %v840 = vunpack.c.l.b16 %v242
    %v841 = vunpack.c.h.b16 %v242
    %v842 = vunpack.c.l.b16 %v243
    %v843 = vunpack.c.h.b16 %v243
    %v844 = vunpack.c.l.b16 %v244
    %v845 = vunpack.c.h.b16 %v244
    %v846 = vunpack.c.l.b16 %v245
    %v847 = vunpack.c.h.b16 %v245
    %v848 = vunpack.c.l.b16 %v246
    %v849 = vunpack.c.h.b16 %v246
    %v850 = vunpack.c.l.b16 %v247
    %v851 = vunpack.c.h.b16 %v247
    %v852 = vunpack.c.l.b16 %v248
    %v853 = vunpack.c.h.b16 %v248
    %v854 = vunpack.c.l.b16 %v249
    %v855 = vunpack.c.h.b16 %v249
    %v856 = vunpack.c.l.b16 %v250
    %v857 = vunpack.c.h.b16 %v250
    %v858 = vunpack.c.l.b16 %v251
    %v859 = vunpack.c.h.b16 %v251
    %v860 = vunpack.c.l.b16 %v252
    %v861 = vunpack.c.h.b16 %v252
    %v862 = vunpack.c.l.b16 %v253
    %v863 = vunpack.c.h.b16 %v253
    %v864 = vunpack.c.l.b16 %v254
    %v865 = vunpack.c.h.b16 %v254
    %v866 = vunpack.c.l.b16 %v255
    %v867 = vunpack.c.h.b16 %v255
    %v868 = vunpack.c.l.b16 %v256
    %v869 = vunpack.c.h.b16 %v256
    %v870 = vunpack.c.l.b16 %v257
    %v871 = vunpack.c.h.b16 %v257
    %v872 = vunpack.c.l.b16 %v258
    %v873 = vunpack.c.h.b16 %v258
    %v874 = vunpack.c.l.b16 %v259
    %v875 = vunpack.c.h.b16 %v259
    %v876 = vunpack.c.l.b16 %v260
    %v877 = vunpack.c.h.b16 %v260
    %v878 = vunpack.c.l.b16 %v261
    %v879 = vunpack.c.h.b16 %v261
    %v880 = vunpack.c.l.b16 %v262
    %v881 = vunpack.c.h.b16 %v262
    %v882 = vunpack.c.l.b16 %v263
    %v883 = vunpack.c.h.b16 %v263
    %v884 = vunpack.c.l.b16 %v264
    %v885 = vunpack.c.h.b16 %v264
    %v886 = vunpack.c.l.b16 %v265
    %v887 = vunpack.c.h.b16 %v265
    %v888 = vunpack.c.l.b16 %v266
    %v889 = vunpack.c.h.b16 %v266
    %v890 = vunpack.c.l.b16 %v267
    %v891 = vunpack.c.h.b16 %v267
    %v892 = vunpack.c.l.b16 %v268
    %v893 = vunpack.c.h.b16 %v268
    %v894 = vunpack.c.l.b16 %v269
    %v895 = vunpack.c.h.b16 %v269
    %v896 = vunpack.c.l.b16 %v270
    %v897 = vunpack.c.h.b16 %v270
    %v898 = vunpack.c.l.b16 %v271
    %v899 = vunpack.c.h.b16 %v271
    %v900 = vunpack.c.l.b16 %v272
    %v901 = vunpack.c.h.b16 %v272
    %v902 = vunpack.c.l.b16 %v273
    %v903 = vunpack.c.h.b16 %v273
    %v904 = vunpack.c.l.b16 %v274
    %v905 = vunpack.c.h.b16 %v274
    %v906 = vunpack.c.l.b16 %v275
    %v907 = vunpack.c.h.b16 %v275
    %v908 = vunpack.c.l.b16 %v276
    %v909 = vunpack.c.h.b16 %v276
    %v910 = vunpack.c.l.b16 %v277
    %v911 = vunpack.c.h.b16 %v277
    %v912 = vunpack.c.l.b16 %v278
    %v913 = vunpack.c.h.b16 %v278
    %v914 = vunpack.c.l.b16 %v279
    %v915 = vunpack.c.h.b16 %v279
    %v916 = vunpack.c.l.b16 %v280
    %v917 = vunpack.c.h.b16 %v280
    %v918 = vunpack.c.l.b16 %v281
    %v919 = vunpack.c.h.b16 %v281
    %v920 = vunpack.c.l.b16 %v282
    %v921 = vunpack.c.h.b16 %v282
    %v922 = vunpack.c.l.b16 %v283
    %v923 = vunpack.c.h.b16 %v283
    %v924 = vunpack.c.l.b16 %v284
    %v925 = vunpack.c.h.b16 %v284
    %v926 = vunpack.c.l.b16 %v285
    %v927 = vunpack.c.h.b16 %v285
    %v928 = vunpack.c.l.b16 %v286
    %v929 = vunpack.c.h.b16 %v286
    %v930 = vunpack.c.l.b16 %v287
    %v931 = vunpack.c.h.b16 %v287
    %v932 = vunpack.c.l.b16 %v288
    %v933 = vunpack.c.h.b16 %v288
    %v934 = vunpack.c.l.b16 %v289
    %v935 = vunpack.c.h.b16 %v289
    %v936 = vunpack.c.l.b16 %v290
    %v937 = vunpack.c.h.b16 %v290
    %v938 = vunpack.c.l.b16 %v291
    %v939 = vunpack.c.h.b16 %v291
    %v940 = vunpack.c.l.b16 %v292
    %v941 = vunpack.c.h.b16 %v292
    %v942 = vunpack.c.l.b16 %v293
    %v943 = vunpack.c.h.b16 %v293
    %v944 = vunpack.c.l.b16 %v294
    %v945 = vunpack.c.h.b16 %v294
    %v946 = vunpack.c.l.b16 %v295
    %v947 = vunpack.c.h.b16 %v295
    %v948 = vunpack.c.l.b16 %v296
    %v949 = vunpack.c.h.b16 %v296
    %v950 = vunpack.c.l.b16 %v297
    %v951 = vunpack.c.h.b16 %v297
    %v952 = vunpack.c.l.b16 %v298
    %v953 = vunpack.c.h.b16 %v298
    %v954 = vunpack.c.l.b16 %v299
    %v955 = vunpack.c.h.b16 %v299
    %v956 = vunpack.c.l.b16 %v300
    %v957 = vunpack.c.h.b16 %v300
    %v958 = vunpack.c.l.b16 %v301
    %v959 = vunpack.c.h.b16 %v301
    %v960 = vunpack.c.l.b16 %v302
    %v961 = vunpack.c.h.b16 %v302
    %v962 = vunpack.c.l.b16 %v303
    %v963 = vunpack.c.h.b16 %v303
    %v964 = vunpack.c.l.b16 %v304
    %v965 = vunpack.c.h.b16 %v304
    %v966 = vunpack.c.l.b16 %v305
    %v967 = vunpack.c.h.b16 %v305
    %v968 = vunpack.c.l.b16 %v306
    %v969 = vunpack.c.h.b16 %v306
    %v970 = vunpack.c.l.b16 %v307
    %v971 = vunpack.c.h.b16 %v307
    %v972 = vunpack.c.l.b16 %v308
    %v973 = vunpack.c.h.b16 %v308
    %v974 = vunpack.c.l.b16 %v309
    %v975 = vunpack.c.h.b16 %v309
    %v976 = vunpack.c.l.b16 %v310
    %v977 = vunpack.c.h.b16 %v310
    %v978 = vunpack.c.l.b16 %v311
    %v979 = vunpack.c.h.b16 %v311
    %v980 = vunpack.c.l.b16 %v312
    %v981 = vunpack.c.h.b16 %v312
    %v982 = vunpack.c.l.b16 %v313
    %v983 = vunpack.c.h.b16 %v313
    %v984 = vunpack.c.l.b16 %v314
    %v985 = vunpack.c.h.b16 %v314
    %v986 = vunpack.c.l.b16 %v315
    %v987 = vunpack.c.h.b16 %v315
    %v988 = vunpack.c.l.b16 %v316
    %v989 = vunpack.c.h.b16 %v316
    %v990 = vunpack.c.l.b16 %v317
    %v991 = vunpack.c.h.b16 %v317
    %v992 = vunpack.c.l.b16 %v318
    %v993 = vunpack.c.h.b16 %v318
    %v994 = vunpack.c.l.b16 %v319
    %v995 = vunpack.c.h.b16 %v319
    %v996 = vunpack.c.l.b16 %v320
    %v997 = vunpack.c.h.b16 %v320
    %v998 = vunpack.c.l.b16 %v321
    %v999 = vunpack.c.h.b16 %v321
    %v1000 = vunpack.c.l.b16 %v322
    %v1001 = vunpack.c.h.b16 %v322
    %v1002 = vunpack.c.l.b16 %v323
    %v1003 = vunpack.c.h.b16 %v323
    %v1004 = vunpack.c.l.b16 %v324
    %v1005 = vunpack.c.h.b16 %v324
    %v1006 = vunpack.c.l.b16 %v325
    %v1007 = vunpack.c.h.b16 %v325
    %v1008 = vunpack.c.l.b16 %v326
    %v1009 = vunpack.c.h.b16 %v326
    %v1010 = vunpack.c.l.b16 %v327
    %v1011 = vunpack.c.h.b16 %v327
    %v1012 = vunpack.c.l.b16 %v328
    %v1013 = vunpack.c.h.b16 %v328
    %v1014 = vunpack.c.l.b16 %v329
    %v1015 = vunpack.c.h.b16 %v329
    %v1016 = vunpack.c.l.b16 %v330
    %v1017 = vunpack.c.h.b16 %v330
    %v1018 = vunpack.c.l.b16 %v331
    %v1019 = vunpack.c.h.b16 %v331
    %v1020 = vunpack.c.l.b16 %v332
    %v1021 = vunpack.c.h.b16 %v332
    %v1022 = vunpack.c.l.b16 %v333
    %v1023 = vunpack.c.h.b16 %v333
    %v1024 = vunpack.c.l.b16 %v334
    %v1025 = vunpack.c.h.b16 %v334
    %v1026 = vunpack.c.l.b16 %v335
    %v1027 = vunpack.c.h.b16 %v335
    %v1028 = vunpack.c.l.b16 %v336
    %v1029 = vunpack.c.h.b16 %v336
    %v1030 = vunpack.c.l.b16 %v337
    %v1031 = vunpack.c.h.b16 %v337
    %v1032 = vunpack.c.l.b16 %v338
    %v1033 = vunpack.c.h.b16 %v338
    %v1034 = vunpack.c.l.b16 %v339
    %v1035 = vunpack.c.h.b16 %v339
    %v1036 = vunpack.c.l.b16 %v340
    %v1037 = vunpack.c.h.b16 %v340
    %v1038 = vunpack.c.l.b16 %v341
    %v1039 = vunpack.c.h.b16 %v341
    %v1040 = vunpack.c.l.b16 %v342
    %v1041 = vunpack.c.h.b16 %v342
    %v1042 = vunpack.c.l.b16 %v343
    %v1043 = vunpack.c.h.b16 %v343
    %v1044 = vunpack.c.l.b16 %v344
    %v1045 = vunpack.c.h.b16 %v344
    %v1046 = vunpack.c.l.b16 %v345
    %v1047 = vunpack.c.h.b16 %v345
    %v1048 = vunpack.c.l.b16 %v346
    %v1049 = vunpack.c.h.b16 %v346
    %v1050 = vunpack.c.l.b16 %v347
    %v1051 = vunpack.c.h.b16 %v347
    %v1052 = vunpack.c.l.b16 %v348
    %v1053 = vunpack.c.h.b16 %v348
    %v1054 = vunpack.c.l.b16 %v349
    %v1055 = vunpack.c.h.b16 %v349
    %v1056 = vunpack.c.l.b16 %v350
    %v1057 = vunpack.c.h.b16 %v350
    %v1058 = vunpack.c.l.b16 %v351
    %v1059 = vunpack.c.h.b16 %v351
    %v1060 = vunpack.c.l.b16 %v352
    %v1061 = vunpack.c.h.b16 %v352
    %v1062 = vunpack.c.l.b16 %v353
    %v1063 = vunpack.c.h.b16 %v353
    %v1064 = vunpack.c.l.b16 %v354
    %v1065 = vunpack.c.h.b16 %v354
    %v1066 = vunpack.c.l.b16 %v355
    %v1067 = vunpack.c.h.b16 %v355
    %v1068 = vunpack.c.l.b16 %v356
    %v1069 = vunpack.c.h.b16 %v356
    %v1070 = vunpack.c.l.b16 %v357
    %v1071 = vunpack.c.h.b16 %v357
    %v1072 = vunpack.c.l.b16 %v358
    %v1073 = vunpack.c.h.b16 %v358
    %v1074 = vunpack.c.l.b16 %v359
    %v1075 = vunpack.c.h.b16 %v359
    %v1076 = vunpack.c.l.b16 %v360
    %v1077 = vunpack.c.h.b16 %v360
    %v1078 = vunpack.c.l.b16 %v361
    %v1079 = vunpack.c.h.b16 %v361
    %v1080 = vunpack.c.l.b16 %v362
    %v1081 = vunpack.c.h.b16 %v362
    %v1082 = vunpack.c.l.b16 %v363
    %v1083 = vunpack.c.h.b16 %v363
    %v1084 = vunpack.c.l.b16 %v364
    %v1085 = vunpack.c.h.b16 %v364
    %v1086 = vunpack.c.l.b16 %v365
    %v1087 = vunpack.c.h.b16 %v365
    %v1088 = vunpack.c.l.b16 %v366
    %v1089 = vunpack.c.h.b16 %v366
    %v1090 = vunpack.c.l.b16 %v367
    %v1091 = vunpack.c.h.b16 %v367
    %v1092 = vunpack.c.l.b16 %v368
    %v1093 = vunpack.c.h.b16 %v368
    %v1094 = vunpack.c.l.b16 %v369
    %v1095 = vunpack.c.h.b16 %v369
    %v1096 = vunpack.c.l.b16 %v370
    %v1097 = vunpack.c.h.b16 %v370
    %v1098 = vunpack.c.l.b16 %v371
    %v1099 = vunpack.c.h.b16 %v371
    %v1100 = vunpack.c.l.b16 %v372
    %v1101 = vunpack.c.h.b16 %v372
    %v1102 = vunpack.c.l.b16 %v373
    %v1103 = vunpack.c.h.b16 %v373
    %v1104 = vunpack.c.l.b16 %v374
    %v1105 = vunpack.c.h.b16 %v374
    %v1106 = vunpack.c.l.b16 %v375
    %v1107 = vunpack.c.h.b16 %v375
    %v1108 = vunpack.c.l.b16 %v376
    %v1109 = vunpack.c.h.b16 %v376
    %v1110 = vunpack.c.l.b16 %v377
    %v1111 = vunpack.c.h.b16 %v377
    %v1112 = vunpack.c.l.b16 %v378
    %v1113 = vunpack.c.h.b16 %v378
    %v1114 = vunpack.c.l.b16 %v379
    %v1115 = vunpack.c.h.b16 %v379
    %v1116 = vunpack.c.l.b16 %v380
    %v1117 = vunpack.c.h.b16 %v380
    %v1118 = vunpack.c.l.b16 %v381
    %v1119 = vunpack.c.h.b16 %v381
    %v1120 = vunpack.c.l.b16 %v382
    %v1121 = vunpack.c.h.b16 %v382
    %v1122 = vunpack.c.l.b16 %v383
    %v1123 = vunpack.c.h.b16 %v383
    %v1124 = vunpack.c.l.b16 %v384
    %v1125 = vunpack.c.h.b16 %v384
    %v1126 = vunpack.c.l.b16 %v385
    %v1127 = vunpack.c.h.b16 %v385
    %v1128 = vunpack.c.l.b16 %v386
    %v1129 = vunpack.c.h.b16 %v386
    %v1130 = vunpack.c.l.b16 %v387
    %v1131 = vunpack.c.h.b16 %v387
    %v1132 = vunpack.c.l.b16 %v388
    %v1133 = vunpack.c.h.b16 %v388
    %v1134 = vunpack.c.l.b16 %v389
    %v1135 = vunpack.c.h.b16 %v389
    %v1136 = vunpack.c.l.b16 %v390
    %v1137 = vunpack.c.h.b16 %v390
    %v1138 = vunpack.c.l.b16 %v391
    %v1139 = vunpack.c.h.b16 %v391
    %v1140 = vunpack.c.l.b16 %v392
    %v1141 = vunpack.c.h.b16 %v392
    %v1142 = vunpack.c.l.b16 %v393
    %v1143 = vunpack.c.h.b16 %v393
    %v1144 = vunpack.c.l.b16 %v394
    %v1145 = vunpack.c.h.b16 %v394
    %v1146 = vunpack.c.l.b16 %v395
    %v1147 = vunpack.c.h.b16 %v395
    %v1148 = vunpack.c.l.b16 %v396
    %v1149 = vunpack.c.h.b16 %v396
    %v1150 = vunpack.c.l.b16 %v397
    %v1151 = vunpack.c.h.b16 %v397
    %v1152 = vunpack.c.l.b16 %v398
    %v1153 = vunpack.c.h.b16 %v398
    %v1154 = vunpack.c.l.b16 %v399
    %v1155 = vunpack.c.h.b16 %v399
    %v1156 = vunpack.c.l.b16 %v400
    %v1157 = vunpack.c.h.b16 %v400
    %v1158 = vunpack.c.l.b16 %v401
    %v1159 = vunpack.c.h.b16 %v401
    %v1160 = vunpack.c.l.b16 %v402
    %v1161 = vunpack.c.h.b16 %v402
    %v1162 = vunpack.c.l.b16 %v403
    %v1163 = vunpack.c.h.b16 %v403
    %v1164 = vunpack.c.l.b16 %v404
    %v1165 = vunpack.c.h.b16 %v404
    %v1166 = vunpack.c.l.b16 %v405
    %v1167 = vunpack.c.h.b16 %v405
    %v1168 = vunpack.c.l.b16 %v406
    %v1169 = vunpack.c.h.b16 %v406
    %v1170 = vunpack.c.l.b16 %v407
    %v1171 = vunpack.c.h.b16 %v407
    %v1172 = vunpack.c.l.b16 %v408
    %v1173 = vunpack.c.h.b16 %v408
    %v1174 = vunpack.c.l.b16 %v409
    %v1175 = vunpack.c.h.b16 %v409
    %v1176 = vunpack.c.l.b16 %v410
    %v1177 = vunpack.c.h.b16 %v410
    %v1178 = vunpack.c.l.b16 %v411
    %v1179 = vunpack.c.h.b16 %v411
    %v1180 = vpack.c.b16 %v684, %v668
    %v1181 = vpack.c.b16 %v685, %v669
    %v1182 = vpack.c.b16 %v686, %v670
    %v1183 = vpack.c.b16 %v687, %v671
    %v1184 = vpack.c.b16 %v688, %v672
    %v1185 = vpack.c.b16 %v689, %v673
    %v1186 = vpack.c.b16 %v690, %v674
    %v1187 = vpack.c.b16 %v691, %v675
    %v1188 = vpack.c.b16 %v692, %v676
    %v1189 = vpack.c.b16 %v693, %v677
    %v1190 = vpack.c.b16 %v694, %v678
    %v1191 = vpack.c.b16 %v695, %v679
    %v1192 = vpack.c.b16 %v696, %v680
    %v1193 = vpack.c.b16 %v697, %v681
    %v1194 = vpack.c.b16 %v698, %v682
    %v1195 = vpack.c.b16 %v699, %v683
    %v1196 = vpack.c.b16 %v716, %v700
    %v1197 = vpack.c.b16 %v717, %v701
    %v1198 = vpack.c.b16 %v718, %v702
    %v1199 = vpack.c.b16 %v719, %v703
    %v1200 = vpack.c.b16 %v720, %v704
    %v1201 = vpack.c.b16 %v721, %v705
    %v1202 = vpack.c.b16 %v722, %v706
    %v1203 = vpack.c.b16 %v723, %v707
    %v1204 = vpack.c.b16 %v724, %v708
    %v1205 = vpack.c.b16 %v725, %v709
    %v1206 = vpack.c.b16 %v726, %v710
    %v1207 = vpack.c.b16 %v727, %v711
    %v1208 = vpack.c.b16 %v728, %v712
    %v1209 = vpack.c.b16 %v729, %v713
    %v1210 = vpack.c.b16 %v730, %v714
    %v1211 = vpack.c.b16 %v731, %v715
    %v1212 = vpack.c.b16 %v748, %v732
    %v1213 = vpack.c.b16 %v749, %v733
    %v1214 = vpack.c.b16 %v750, %v734
    %v1215 = vpack.c.b16 %v751, %v735
    %v1216 = vpack.c.b16 %v752, %v736
    %v1217 = vpack.c.b16 %v753, %v737
    %v1218 = vpack.c.b16 %v754, %v738
    %v1219 = vpack.c.b16 %v755, %v739
    %v1220 = vpack.c.b16 %v756, %v740
    %v1221 = vpack.c.b16 %v757, %v741
    %v1222 = vpack.c.b16 %v758, %v742
    %v1223 = vpack.c.b16 %v759, %v743
    %v1224 = vpack.c.b16 %v760, %v744
    %v1225 = vpack.c.b16 %v761, %v745
    %v1226 = vpack.c.b16 %v762, %v746
    %v1227 = vpack.c.b16 %v763, %v747
    %v1228 = vpack.c.b16 %v780, %v764
    %v1229 = vpack.c.b16 %v781, %v765
    %v1230 = vpack.c.b16 %v782, %v766
    %v1231 = vpack.c.b16 %v783, %v767
    %v1232 = vpack.c.b16 %v784, %v768
    %v1233 = vpack.c.b16 %v785, %v769
    %v1234 = vpack.c.b16 %v786, %v770
    %v1235 = vpack.c.b16 %v787, %v771
    %v1236 = vpack.c.b16 %v788, %v772
    %v1237 = vpack.c.b16 %v789, %v773
    %v1238 = vpack.c.b16 %v790, %v774
    %v1239 = vpack.c.b16 %v791, %v775
    %v1240 = vpack.c.b16 %v792, %v776
    %v1241 = vpack.c.b16 %v793, %v777
    %v1242 = vpack.c.b16 %v794, %v778
    %v1243 = vpack.c.b16 %v795, %v779
    %v1244 = vpack.c.b16 %v812, %v796
    %v1245 = vpack.c.b16 %v813, %v797
    %v1246 = vpack.c.b16 %v814, %v798
    %v1247 = vpack.c.b16 %v815, %v799
    %v1248 = vpack.c.b16 %v816, %v800
    %v1249 = vpack.c.b16 %v817, %v801
    %v1250 = vpack.c.b16 %v818, %v802
    %v1251 = vpack.c.b16 %v819, %v803
    %v1252 = vpack.c.b16 %v820, %v804
    %v1253 = vpack.c.b16 %v821, %v805
    %v1254 = vpack.c.b16 %v822, %v806
    %v1255 = vpack.c.b16 %v823, %v807
    %v1256 = vpack.c.b16 %v824, %v808
    %v1257 = vpack.c.b16 %v825, %v809
    %v1258 = vpack.c.b16 %v826, %v810
    %v1259 = vpack.c.b16 %v827, %v811
    %v1260 = vpack.c.b16 %v844, %v828
    %v1261 = vpack.c.b16 %v845, %v829
    %v1262 = vpack.c.b16 %v846, %v830
    %v1263 = vpack.c.b16 %v847, %v831
    %v1264 = vpack.c.b16 %v848, %v832
    %v1265 = vpack.c.b16 %v849, %v833
    %v1266 = vpack.c.b16 %v850, %v834
    %v1267 = vpack.c.b16 %v851, %v835
    %v1268 = vpack.c.b16 %v852, %v836
    %v1269 = vpack.c.b16 %v853, %v837
    %v1270 = vpack.c.b16 %v854, %v838
    %v1271 = vpack.c.b16 %v855, %v839
    %v1272 = vpack.c.b16 %v856, %v840
    %v1273 = vpack.c.b16 %v857, %v841
    %v1274 = vpack.c.b16 %v858, %v842
    %v1275 = vpack.c.b16 %v859, %v843
    %v1276 = vpack.c.b16 %v876, %v860
    %v1277 = vpack.c.b16 %v877, %v861
    %v1278 = vpack.c.b16 %v878, %v862
    %v1279 = vpack.c.b16 %v879, %v863
    %v1280 = vpack.c.b16 %v880, %v864
    %v1281 = vpack.c.b16 %v881, %v865
    %v1282 = vpack.c.b16 %v882, %v866
    %v1283 = vpack.c.b16 %v883, %v867
    %v1284 = vpack.c.b16 %v884, %v868
    %v1285 = vpack.c.b16 %v885, %v869
    %v1286 = vpack.c.b16 %v886, %v870
    %v1287 = vpack.c.b16 %v887, %v871
    %v1288 = vpack.c.b16 %v888, %v872
    %v1289 = vpack.c.b16 %v889, %v873
    %v1290 = vpack.c.b16 %v890, %v874
    %v1291 = vpack.c.b16 %v891, %v875
    %v1292 = vpack.c.b16 %v908, %v892
    %v1293 = vpack.c.b16 %v909, %v893
    %v1294 = vpack.c.b16 %v910, %v894
    %v1295 = vpack.c.b16 %v911, %v895
    %v1296 = vpack.c.b16 %v912, %v896
    %v1297 = vpack.c.b16 %v913, %v897
    %v1298 = vpack.c.b16 %v914, %v898
    %v1299 = vpack.c.b16 %v915, %v899
    %v1300 = vpack.c.b16 %v916, %v900
    %v1301 = vpack.c.b16 %v917, %v901
    %v1302 = vpack.c.b16 %v918, %v902
    %v1303 = vpack.c.b16 %v919, %v903
    %v1304 = vpack.c.b16 %v920, %v904
    %v1305 = vpack.c.b16 %v921, %v905
    %v1306 = vpack.c.b16 %v922, %v906
    %v1307 = vpack.c.b16 %v923, %v907
    %v1308 = vpack.c.b16 %v940, %v924
    %v1309 = vpack.c.b16 %v941, %v925
    %v1310 = vpack.c.b16 %v942, %v926
    %v1311 = vpack.c.b16 %v943, %v927
    %v1312 = vpack.c.b16 %v944, %v928
    %v1313 = vpack.c.b16 %v945, %v929
    %v1314 = vpack.c.b16 %v946, %v930
    %v1315 = vpack.c.b16 %v947, %v931
    %v1316 = vpack.c.b16 %v948, %v932
    %v1317 = vpack.c.b16 %v949, %v933
    %v1318 = vpack.c.b16 %v950, %v934
    %v1319 = vpack.c.b16 %v951, %v935
    %v1320 = vpack.c.b16 %v952, %v936
    %v1321 = vpack.c.b16 %v953, %v937
    %v1322 = vpack.c.b16 %v954, %v938
    %v1323 = vpack.c.b16 %v955, %v939
    %v1324 = vpack.c.b16 %v972, %v956
    %v1325 = vpack.c.b16 %v973, %v957
    %v1326 = vpack.c.b16 %v974, %v958
    %v1327 = vpack.c.b16 %v975, %v959
    %v1328 = vpack.c.b16 %v976, %v960
    %v1329 = vpack.c.b16 %v977, %v961
    %v1330 = vpack.c.b16 %v978, %v962
    %v1331 = vpack.c.b16 %v979, %v963
    %v1332 = vpack.c.b16 %v980, %v964
    %v1333 = vpack.c.b16 %v981, %v965
    %v1334 = vpack.c.b16 %v982, %v966
    %v1335 = vpack.c.b16 %v983, %v967
    %v1336 = vpack.c.b16 %v984, %v968
    %v1337 = vpack.c.b16 %v985, %v969
    %v1338 = vpack.c.b16 %v986, %v970
    %v1339 = vpack.c.b16 %v987, %v971
    %v1340 = vpack.c.b16 %v1004, %v988
    %v1341 = vpack.c.b16 %v1005, %v989
    %v1342 = vpack.c.b16 %v1006, %v990
    %v1343 = vpack.c.b16 %v1007, %v991
    %v1344 = vpack.c.b16 %v1008, %v992
    %v1345 = vpack.c.b16 %v1009, %v993
    %v1346 = vpack.c.b16 %v1010, %v994
    %v1347 = vpack.c.b16 %v1011, %v995
    %v1348 = vpack.c.b16 %v1012, %v996
    %v1349 = vpack.c.b16 %v1013, %v997
    %v1350 = vpack.c.b16 %v1014, %v998
    %v1351 = vpack.c.b16 %v1015, %v999
    %v1352 = vpack.c.b16 %v1016, %v1000
    %v1353 = vpack.c.b16 %v1017, %v1001
    %v1354 = vpack.c.b16 %v1018, %v1002
    %v1355 = vpack.c.b16 %v1019, %v1003
    %v1356 = vpack.c.b16 %v1036, %v1020
    %v1357 = vpack.c.b16 %v1037, %v1021
    %v1358 = vpack.c.b16 %v1038, %v1022
    %v1359 = vpack.c.b16 %v1039, %v1023
    %v1360 = vpack.c.b16 %v1040, %v1024
    %v1361 = vpack.c.b16 %v1041, %v1025
    %v1362 = vpack.c.b16 %v1042, %v1026
    %v1363 = vpack.c.b16 %v1043, %v1027
    %v1364 = vpack.c.b16 %v1044, %v1028
    %v1365 = vpack.c.b16 %v1045, %v1029
    %v1366 = vpack.c.b16 %v1046, %v1030
    %v1367 = vpack.c.b16 %v1047, %v1031
    %v1368 = vpack.c.b16 %v1048, %v1032
    %v1369 = vpack.c.b16 %v1049, %v1033
    %v1370 = vpack.c.b16 %v1050, %v1034
    %v1371 = vpack.c.b16 %v1051, %v1035
    %v1372 = vpack.c.b16 %v1068, %v1052
    %v1373 = vpack.c.b16 %v1069, %v1053
    %v1374 = vpack.c.b16 %v1070, %v1054
    %v1375 = vpack.c.b16 %v1071, %v1055
    %v1376 = vpack.c.b16 %v1072, %v1056
    %v1377 = vpack.c.b16 %v1073, %v1057
    %v1378 = vpack.c.b16 %v1074, %v1058
    %v1379 = vpack.c.b16 %v1075, %v1059
    %v1380 = vpack.c.b16 %v1076, %v1060
    %v1381 = vpack.c.b16 %v1077, %v1061
    %v1382 = vpack.c.b16 %v1078, %v1062
    %v1383 = vpack.c.b16 %v1079, %v1063
    %v1384 = vpack.c.b16 %v1080, %v1064
    %v1385 = vpack.c.b16 %v1081, %v1065
    %v1386 = vpack.c.b16 %v1082, %v1066
    %v1387 = vpack.c.b16 %v1083, %v1067
    %v1388 = vpack.c.b16 %v1100, %v1084
    %v1389 = vpack.c.b16 %v1101, %v1085
    %v1390 = vpack.c.b16 %v1102, %v1086
    %v1391 = vpack.c.b16 %v1103, %v1087
    %v1392 = vpack.c.b16 %v1104, %v1088
    %v1393 = vpack.c.b16 %v1105, %v1089
    %v1394 = vpack.c.b16 %v1106, %v1090
    %v1395 = vpack.c.b16 %v1107, %v1091
    %v1396 = vpack.c.b16 %v1108, %v1092
    %v1397 = vpack.c.b16 %v1109, %v1093
    %v1398 = vpack.c.b16 %v1110, %v1094
    %v1399 = vpack.c.b16 %v1111, %v1095
    %v1400 = vpack.c.b16 %v1112, %v1096
    %v1401 = vpack.c.b16 %v1113, %v1097
    %v1402 = vpack.c.b16 %v1114, %v1098
    %v1403 = vpack.c.b16 %v1115, %v1099
    %v1404 = vpack.c.b16 %v1132, %v1116
    %v1405 = vpack.c.b16 %v1133, %v1117
    %v1406 = vpack.c.b16 %v1134, %v1118
    %v1407 = vpack.c.b16 %v1135, %v1119
    %v1408 = vpack.c.b16 %v1136, %v1120
    %v1409 = vpack.c.b16 %v1137, %v1121
    %v1410 = vpack.c.b16 %v1138, %v1122
    %v1411 = vpack.c.b16 %v1139, %v1123
    %v1412 = vpack.c.b16 %v1140, %v1124
    %v1413 = vpack.c.b16 %v1141, %v1125
    %v1414 = vpack.c.b16 %v1142, %v1126
    %v1415 = vpack.c.b16 %v1143, %v1127
    %v1416 = vpack.c.b16 %v1144, %v1128
    %v1417 = vpack.c.b16 %v1145, %v1129
    %v1418 = vpack.c.b16 %v1146, %v1130
    %v1419 = vpack.c.b16 %v1147, %v1131
    %v1420 = vpack.c.b16 %v1164, %v1148
    %v1421 = vpack.c.b16 %v1165, %v1149
    %v1422 = vpack.c.b16 %v1166, %v1150
    %v1423 = vpack.c.b16 %v1167, %v1151
    %v1424 = vpack.c.b16 %v1168, %v1152
    %v1425 = vpack.c.b16 %v1169, %v1153
    %v1426 = vpack.c.b16 %v1170, %v1154
    %v1427 = vpack.c.b16 %v1171, %v1155
    %v1428 = vpack.c.b16 %v1172, %v1156
    %v1429 = vpack.c.b16 %v1173, %v1157
    %v1430 = vpack.c.b16 %v1174, %v1158
    %v1431 = vpack.c.b16 %v1175, %v1159
    %v1432 = vpack.c.b16 %v1176, %v1160
    %v1433 = vpack.c.b16 %v1177, %v1161
    %v1434 = vpack.c.b16 %v1178, %v1162
    %v1435 = vpack.c.b16 %v1179, %v1163
    %1692 = vmatprep.subr.bf16.mxu0 %v1181
    %1693 = vmatpush1.bf16.msra.mxu0 %v1180
    %1694 = vmatprep.subr.bf16.mxu0 %v1197
    %1695 = vmatpush1.bf16.msra.mxu0 %v1196
    %1696 = vmatprep.subr.bf16.mxu0 %v1213
    %1697 = vmatpush1.bf16.msra.mxu0 %v1212
    %1698 = vmatprep.subr.bf16.mxu0 %v1229
    %1699 = vmatpush1.bf16.msra.mxu0 %v1228
    %1700 = vmatprep.subr.bf16.mxu0 %v1245
    %1701 = vmatpush1.bf16.msra.mxu0 %v1244
    %1702 = vmatprep.subr.bf16.mxu0 %v1261
    %1703 = vmatpush1.bf16.msra.mxu0 %v1260
    %1704 = vmatprep.subr.bf16.mxu0 %v1277
    %1705 = vmatpush1.bf16.msra.mxu0 %v1276
    %1706 = vmatprep.subr.bf16.mxu0 %v1293
    %1707 = vmatpush1.bf16.msra.mxu0 %v1292
    %1708 = vmatprep.subr.bf16.mxu0 %v1309
    %1709 = vmatpush1.bf16.msra.mxu0 %v1308
    %1710 = vmatprep.subr.bf16.mxu0 %v1325
    %1711 = vmatpush1.bf16.msra.mxu0 %v1324
    %1712 = vmatprep.subr.bf16.mxu0 %v1341
    %1713 = vmatpush1.bf16.msra.mxu0 %v1340
    %1714 = vmatprep.subr.bf16.mxu0 %v1357
    %1715 = vmatpush1.bf16.msra.mxu0 %v1356
    %1716 = vmatprep.subr.bf16.mxu0 %v1373
    %1717 = vmatpush1.bf16.msra.mxu0 %v1372
    %1718 = vmatprep.subr.bf16.mxu0 %v1389
    %1719 = vmatpush1.bf16.msra.mxu0 %v1388
    %1720 = vmatprep.subr.bf16.mxu0 %v1405
    %1721 = vmatpush1.bf16.msra.mxu0 %v1404
    %1722 = vmatprep.subr.bf16.mxu0 %v1421
    %1723 = vmatpush1.bf16.msra.mxu0 %v1420
    %1724 = vmatprep.mubr.bf16.mxu0 %v155
    %1725 = vmatmul.mubr.bf16.gmra.mrb[0].mxu0 %v154
    %v1726 = vpop.f32.mrb[0].mxu0
    %v1727 = vadd.f32 0.0, %v1726
    %v1728 = vpop.f32.mrb[0].mxu0
    %v1729 = vadd.f32 0.0, %v1728
    %v1730 = vpop.f32.mrb[0].mxu0
    %v1731 = vpop.f32.mrb[0].mxu0
    %1732 = vdwg.mxu0
    %1733 = vmatprep.subr.bf16.mxu0 %v1183
    %1734 = vmatpush1.bf16.msra.mxu0 %v1182
    %1735 = vmatprep.subr.bf16.mxu0 %v1199
    %1736 = vmatpush1.bf16.msra.mxu0 %v1198
    %1737 = vmatprep.subr.bf16.mxu0 %v1215
    %1738 = vmatpush1.bf16.msra.mxu0 %v1214
    %1739 = vmatprep.subr.bf16.mxu0 %v1231
    %1740 = vmatpush1.bf16.msra.mxu0 %v1230
    %1741 = vmatprep.subr.bf16.mxu0 %v1247
    %1742 = vmatpush1.bf16.msra.mxu0 %v1246
    %1743 = vmatprep.subr.bf16.mxu0 %v1263
    %1744 = vmatpush1.bf16.msra.mxu0 %v1262
    %1745 = vmatprep.subr.bf16.mxu0 %v1279
    %1746 = vmatpush1.bf16.msra.mxu0 %v1278
    %1747 = vmatprep.subr.bf16.mxu0 %v1295
    %1748 = vmatpush1.bf16.msra.mxu0 %v1294
    %1749 = vmatprep.subr.bf16.mxu0 %v1311
    %1750 = vmatpush1.bf16.msra.mxu0 %v1310
    %1751 = vmatprep.subr.bf16.mxu0 %v1327
    %1752 = vmatpush1.bf16.msra.mxu0 %v1326
    %1753 = vmatprep.subr.bf16.mxu0 %v1343
    %1754 = vmatpush1.bf16.msra.mxu0 %v1342
    %1755 = vmatprep.subr.bf16.mxu0 %v1359
    %1756 = vmatpush1.bf16.msra.mxu0 %v1358
    %1757 = vmatprep.subr.bf16.mxu0 %v1375
    %1758 = vmatpush1.bf16.msra.mxu0 %v1374
    %1759 = vmatprep.subr.bf16.mxu0 %v1391
    %1760 = vmatpush1.bf16.msra.mxu0 %v1390
    %1761 = vmatprep.subr.bf16.mxu0 %v1407
    %1762 = vmatpush1.bf16.msra.mxu0 %v1406
    %1763 = vmatprep.subr.bf16.mxu0 %v1423
    %1764 = vmatpush1.bf16.msra.mxu0 %v1422
    %1765 = vmatprep.mubr.bf16.mxu0 %v155
    %1766 = vmatmul.mubr.bf16.gmra.mrb[0].mxu0 %v154
    %v1767 = vpop.f32.mrb[0].mxu0
    %v1768 = vadd.f32 0.0, %v1767
    %v1769 = vpop.f32.mrb[0].mxu0
    %v1770 = vadd.f32 0.0, %v1769
    %v1771 = vpop.f32.mrb[0].mxu0
    %v1772 = vpop.f32.mrb[0].mxu0
    %1773 = vdwg.mxu0
    %1774 = vmatprep.subr.bf16.mxu0 %v1185
    %1775 = vmatpush1.bf16.msra.mxu0 %v1184
    %1776 = vmatprep.subr.bf16.mxu0 %v1201
    %1777 = vmatpush1.bf16.msra.mxu0 %v1200
    %1778 = vmatprep.subr.bf16.mxu0 %v1217
    %1779 = vmatpush1.bf16.msra.mxu0 %v1216
    %1780 = vmatprep.subr.bf16.mxu0 %v1233
    %1781 = vmatpush1.bf16.msra.mxu0 %v1232
    %1782 = vmatprep.subr.bf16.mxu0 %v1249
    %1783 = vmatpush1.bf16.msra.mxu0 %v1248
    %1784 = vmatprep.subr.bf16.mxu0 %v1265
    %1785 = vmatpush1.bf16.msra.mxu0 %v1264
    %1786 = vmatprep.subr.bf16.mxu0 %v1281
    %1787 = vmatpush1.bf16.msra.mxu0 %v1280
    %1788 = vmatprep.subr.bf16.mxu0 %v1297
    %1789 = vmatpush1.bf16.msra.mxu0 %v1296
    %1790 = vmatprep.subr.bf16.mxu0 %v1313
    %1791 = vmatpush1.bf16.msra.mxu0 %v1312
    %1792 = vmatprep.subr.bf16.mxu0 %v1329
    %1793 = vmatpush1.bf16.msra.mxu0 %v1328
    %1794 = vmatprep.subr.bf16.mxu0 %v1345
    %1795 = vmatpush1.bf16.msra.mxu0 %v1344
    %1796 = vmatprep.subr.bf16.mxu0 %v1361
    %1797 = vmatpush1.bf16.msra.mxu0 %v1360
    %1798 = vmatprep.subr.bf16.mxu0 %v1377
    %1799 = vmatpush1.bf16.msra.mxu0 %v1376
    %1800 = vmatprep.subr.bf16.mxu0 %v1393
    %1801 = vmatpush1.bf16.msra.mxu0 %v1392
    %1802 = vmatprep.subr.bf16.mxu0 %v1409
    %1803 = vmatpush1.bf16.msra.mxu0 %v1408
    %1804 = vmatprep.subr.bf16.mxu0 %v1425
    %1805 = vmatpush1.bf16.msra.mxu0 %v1424
    %1806 = vmatprep.mubr.bf16.mxu0 %v155
    %1807 = vmatmul.mubr.bf16.gmra.mrb[0].mxu0 %v154
    %v1808 = vpop.f32.mrb[0].mxu0
    %v1809 = vadd.f32 0.0, %v1808
    %v1810 = vpop.f32.mrb[0].mxu0
    %v1811 = vadd.f32 0.0, %v1810
    %v1812 = vpop.f32.mrb[0].mxu0
    %v1813 = vpop.f32.mrb[0].mxu0
    %1814 = vdwg.mxu0
    %1815 = vmatprep.subr.bf16.mxu0 %v1187
    %1816 = vmatpush1.bf16.msra.mxu0 %v1186
    %1817 = vmatprep.subr.bf16.mxu0 %v1203
    %1818 = vmatpush1.bf16.msra.mxu0 %v1202
    %1819 = vmatprep.subr.bf16.mxu0 %v1219
    %1820 = vmatpush1.bf16.msra.mxu0 %v1218
    %1821 = vmatprep.subr.bf16.mxu0 %v1235
    %1822 = vmatpush1.bf16.msra.mxu0 %v1234
    %1823 = vmatprep.subr.bf16.mxu0 %v1251
    %1824 = vmatpush1.bf16.msra.mxu0 %v1250
    %1825 = vmatprep.subr.bf16.mxu0 %v1267
    %1826 = vmatpush1.bf16.msra.mxu0 %v1266
    %1827 = vmatprep.subr.bf16.mxu0 %v1283
    %1828 = vmatpush1.bf16.msra.mxu0 %v1282
    %1829 = vmatprep.subr.bf16.mxu0 %v1299
    %1830 = vmatpush1.bf16.msra.mxu0 %v1298
    %1831 = vmatprep.subr.bf16.mxu0 %v1315
    %1832 = vmatpush1.bf16.msra.mxu0 %v1314
    %1833 = vmatprep.subr.bf16.mxu0 %v1331
    %1834 = vmatpush1.bf16.msra.mxu0 %v1330
    %1835 = vmatprep.subr.bf16.mxu0 %v1347
    %1836 = vmatpush1.bf16.msra.mxu0 %v1346
    %1837 = vmatprep.subr.bf16.mxu0 %v1363
    %1838 = vmatpush1.bf16.msra.mxu0 %v1362
    %1839 = vmatprep.subr.bf16.mxu0 %v1379
    %1840 = vmatpush1.bf16.msra.mxu0 %v1378
    %1841 = vmatprep.subr.bf16.mxu0 %v1395
    %1842 = vmatpush1.bf16.msra.mxu0 %v1394
    %1843 = vmatprep.subr.bf16.mxu0 %v1411
    %1844 = vmatpush1.bf16.msra.mxu0 %v1410
    %1845 = vmatprep.subr.bf16.mxu0 %v1427
    %1846 = vmatpush1.bf16.msra.mxu0 %v1426
    %1847 = vmatprep.mubr.bf16.mxu0 %v155
    %1848 = vmatmul.mubr.bf16.gmra.mrb[0].mxu0 %v154
    %v1849 = vpop.f32.mrb[0].mxu0
    %v1850 = vadd.f32 0.0, %v1849
    %v1851 = vpop.f32.mrb[0].mxu0
    %v1852 = vadd.f32 0.0, %v1851
    %v1853 = vpop.f32.mrb[0].mxu0
    %v1854 = vpop.f32.mrb[0].mxu0
    %1855 = vdwg.mxu0
    %1856 = vmatprep.subr.bf16.mxu0 %v1189
    %1857 = vmatpush1.bf16.msra.mxu0 %v1188
    %1858 = vmatprep.subr.bf16.mxu0 %v1205
    %1859 = vmatpush1.bf16.msra.mxu0 %v1204
    %1860 = vmatprep.subr.bf16.mxu0 %v1221
    %1861 = vmatpush1.bf16.msra.mxu0 %v1220
    %1862 = vmatprep.subr.bf16.mxu0 %v1237
    %1863 = vmatpush1.bf16.msra.mxu0 %v1236
    %1864 = vmatprep.subr.bf16.mxu0 %v1253
    %1865 = vmatpush1.bf16.msra.mxu0 %v1252
    %1866 = vmatprep.subr.bf16.mxu0 %v1269
    %1867 = vmatpush1.bf16.msra.mxu0 %v1268
    %1868 = vmatprep.subr.bf16.mxu0 %v1285
    %1869 = vmatpush1.bf16.msra.mxu0 %v1284
    %1870 = vmatprep.subr.bf16.mxu0 %v1301
    %1871 = vmatpush1.bf16.msra.mxu0 %v1300
    %1872 = vmatprep.subr.bf16.mxu0 %v1317
    %1873 = vmatpush1.bf16.msra.mxu0 %v1316
    %1874 = vmatprep.subr.bf16.mxu0 %v1333
    %1875 = vmatpush1.bf16.msra.mxu0 %v1332
    %1876 = vmatprep.subr.bf16.mxu0 %v1349
    %1877 = vmatpush1.bf16.msra.mxu0 %v1348
    %1878 = vmatprep.subr.bf16.mxu0 %v1365
    %1879 = vmatpush1.bf16.msra.mxu0 %v1364
    %1880 = vmatprep.subr.bf16.mxu0 %v1381
    %1881 = vmatpush1.bf16.msra.mxu0 %v1380
    %1882 = vmatprep.subr.bf16.mxu0 %v1397
    %1883 = vmatpush1.bf16.msra.mxu0 %v1396
    %1884 = vmatprep.subr.bf16.mxu0 %v1413
    %1885 = vmatpush1.bf16.msra.mxu0 %v1412
    %1886 = vmatprep.subr.bf16.mxu0 %v1429
    %1887 = vmatpush1.bf16.msra.mxu0 %v1428
    %1888 = vmatprep.mubr.bf16.mxu0 %v155
    %1889 = vmatmul.mubr.bf16.gmra.mrb[0].mxu0 %v154
    %v1890 = vpop.f32.mrb[0].mxu0
    %v1891 = vadd.f32 0.0, %v1890
    %v1892 = vpop.f32.mrb[0].mxu0
    %v1893 = vadd.f32 0.0, %v1892
    %v1894 = vpop.f32.mrb[0].mxu0
    %v1895 = vpop.f32.mrb[0].mxu0
    %1896 = vdwg.mxu0
    %1897 = vmatprep.subr.bf16.mxu0 %v1191
    %1898 = vmatpush1.bf16.msra.mxu0 %v1190
    %1899 = vmatprep.subr.bf16.mxu0 %v1207
    %1900 = vmatpush1.bf16.msra.mxu0 %v1206
    %1901 = vmatprep.subr.bf16.mxu0 %v1223
    %1902 = vmatpush1.bf16.msra.mxu0 %v1222
    %1903 = vmatprep.subr.bf16.mxu0 %v1239
    %1904 = vmatpush1.bf16.msra.mxu0 %v1238
    %1905 = vmatprep.subr.bf16.mxu0 %v1255
    %1906 = vmatpush1.bf16.msra.mxu0 %v1254
    %1907 = vmatprep.subr.bf16.mxu0 %v1271
    %1908 = vmatpush1.bf16.msra.mxu0 %v1270
    %1909 = vmatprep.subr.bf16.mxu0 %v1287
    %1910 = vmatpush1.bf16.msra.mxu0 %v1286
    %1911 = vmatprep.subr.bf16.mxu0 %v1303
    %1912 = vmatpush1.bf16.msra.mxu0 %v1302
    %1913 = vmatprep.subr.bf16.mxu0 %v1319
    %1914 = vmatpush1.bf16.msra.mxu0 %v1318
    %1915 = vmatprep.subr.bf16.mxu0 %v1335
    %1916 = vmatpush1.bf16.msra.mxu0 %v1334
    %1917 = vmatprep.subr.bf16.mxu0 %v1351
    %1918 = vmatpush1.bf16.msra.mxu0 %v1350
    %1919 = vmatprep.subr.bf16.mxu0 %v1367
    %1920 = vmatpush1.bf16.msra.mxu0 %v1366
    %1921 = vmatprep.subr.bf16.mxu0 %v1383
    %1922 = vmatpush1.bf16.msra.mxu0 %v1382
    %1923 = vmatprep.subr.bf16.mxu0 %v1399
    %1924 = vmatpush1.bf16.msra.mxu0 %v1398
    %1925 = vmatprep.subr.bf16.mxu0 %v1415
    %1926 = vmatpush1.bf16.msra.mxu0 %v1414
    %1927 = vmatprep.subr.bf16.mxu0 %v1431
    %1928 = vmatpush1.bf16.msra.mxu0 %v1430
    %1929 = vmatprep.mubr.bf16.mxu0 %v155
    %1930 = vmatmul.mubr.bf16.gmra.mrb[0].mxu0 %v154
    %v1931 = vpop.f32.mrb[0].mxu0
    %v1932 = vadd.f32 0.0, %v1931
    %v1933 = vpop.f32.mrb[0].mxu0
    %v1934 = vadd.f32 0.0, %v1933
    %v1935 = vpop.f32.mrb[0].mxu0
    %v1936 = vpop.f32.mrb[0].mxu0
    %1937 = vdwg.mxu0
    %1938 = vmatprep.subr.bf16.mxu0 %v1193
    %1939 = vmatpush1.bf16.msra.mxu0 %v1192
    %1940 = vmatprep.subr.bf16.mxu0 %v1209
    %1941 = vmatpush1.bf16.msra.mxu0 %v1208
    %1942 = vmatprep.subr.bf16.mxu0 %v1225
    %1943 = vmatpush1.bf16.msra.mxu0 %v1224
    %1944 = vmatprep.subr.bf16.mxu0 %v1241
    %1945 = vmatpush1.bf16.msra.mxu0 %v1240
    %1946 = vmatprep.subr.bf16.mxu0 %v1257
    %1947 = vmatpush1.bf16.msra.mxu0 %v1256
    %1948 = vmatprep.subr.bf16.mxu0 %v1273
    %1949 = vmatpush1.bf16.msra.mxu0 %v1272
    %1950 = vmatprep.subr.bf16.mxu0 %v1289
    %1951 = vmatpush1.bf16.msra.mxu0 %v1288
    %1952 = vmatprep.subr.bf16.mxu0 %v1305
    %1953 = vmatpush1.bf16.msra.mxu0 %v1304
    %1954 = vmatprep.subr.bf16.mxu0 %v1321
    %1955 = vmatpush1.bf16.msra.mxu0 %v1320
    %1956 = vmatprep.subr.bf16.mxu0 %v1337
    %1957 = vmatpush1.bf16.msra.mxu0 %v1336
    %1958 = vmatprep.subr.bf16.mxu0 %v1353
    %1959 = vmatpush1.bf16.msra.mxu0 %v1352
    %1960 = vmatprep.subr.bf16.mxu0 %v1369
    %1961 = vmatpush1.bf16.msra.mxu0 %v1368
    %1962 = vmatprep.subr.bf16.mxu0 %v1385
    %1963 = vmatpush1.bf16.msra.mxu0 %v1384
    %1964 = vmatprep.subr.bf16.mxu0 %v1401
    %1965 = vmatpush1.bf16.msra.mxu0 %v1400
    %1966 = vmatprep.subr.bf16.mxu0 %v1417
    %1967 = vmatpush1.bf16.msra.mxu0 %v1416
    %1968 = vmatprep.subr.bf16.mxu0 %v1433
    %1969 = vmatpush1.bf16.msra.mxu0 %v1432
    %1970 = vmatprep.mubr.bf16.mxu0 %v155
    %1971 = vmatmul.mubr.bf16.gmra.mrb[0].mxu0 %v154
    %v1972 = vpop.f32.mrb[0].mxu0
    %v1973 = vadd.f32 0.0, %v1972
    %v1974 = vpop.f32.mrb[0].mxu0
    %v1975 = vadd.f32 0.0, %v1974
    %v1976 = vpop.f32.mrb[0].mxu0
    %v1977 = vpop.f32.mrb[0].mxu0
    %1978 = vdwg.mxu0
    %1979 = vmatprep.subr.bf16.mxu0 %v1195
    %1980 = vmatpush1.bf16.msra.mxu0 %v1194
    %1981 = vmatprep.subr.bf16.mxu0 %v1211
    %1982 = vmatpush1.bf16.msra.mxu0 %v1210
    %1983 = vmatprep.subr.bf16.mxu0 %v1227
    %1984 = vmatpush1.bf16.msra.mxu0 %v1226
    %1985 = vmatprep.subr.bf16.mxu0 %v1243
    %1986 = vmatpush1.bf16.msra.mxu0 %v1242
    %1987 = vmatprep.subr.bf16.mxu0 %v1259
    %1988 = vmatpush1.bf16.msra.mxu0 %v1258
    %1989 = vmatprep.subr.bf16.mxu0 %v1275
    %1990 = vmatpush1.bf16.msra.mxu0 %v1274
    %1991 = vmatprep.subr.bf16.mxu0 %v1291
    %1992 = vmatpush1.bf16.msra.mxu0 %v1290
    %1993 = vmatprep.subr.bf16.mxu0 %v1307
    %1994 = vmatpush1.bf16.msra.mxu0 %v1306
    %1995 = vmatprep.subr.bf16.mxu0 %v1323
    %1996 = vmatpush1.bf16.msra.mxu0 %v1322
    %1997 = vmatprep.subr.bf16.mxu0 %v1339
    %1998 = vmatpush1.bf16.msra.mxu0 %v1338
    %1999 = vmatprep.subr.bf16.mxu0 %v1355
    %2000 = vmatpush1.bf16.msra.mxu0 %v1354
    %2001 = vmatprep.subr.bf16.mxu0 %v1371
    %2002 = vmatpush1.bf16.msra.mxu0 %v1370
    %2003 = vmatprep.subr.bf16.mxu0 %v1387
    %2004 = vmatpush1.bf16.msra.mxu0 %v1386
    %2005 = vmatprep.subr.bf16.mxu0 %v1403
    %2006 = vmatpush1.bf16.msra.mxu0 %v1402
    %2007 = vmatprep.subr.bf16.mxu0 %v1419
    %2008 = vmatpush1.bf16.msra.mxu0 %v1418
    %2009 = vmatprep.subr.bf16.mxu0 %v1435
    %2010 = vmatpush1.bf16.msra.mxu0 %v1434
    %2011 = vmatprep.mubr.bf16.mxu0 %v155
    %2012 = vmatmul.mubr.bf16.gmra.mrb[0].mxu0 %v154
    %v2013 = vpop.f32.mrb[0].mxu0
    %v2014 = vadd.f32 0.0, %v2013
    %v2015 = vpop.f32.mrb[0].mxu0
    %v2016 = vadd.f32 0.0, %v2015
    %v2017 = vpop.f32.mrb[0].mxu0
    %v2018 = vpop.f32.mrb[0].mxu0
    %2019 = vdwg.mxu0
    %v2020 = vmax.f32 %v1727, 0.0
    %v2021 = vmax.f32 %v1729, 0.0
    %v2022 = vmax.f32 %v1768, 0.0
    %v2023 = vmax.f32 %v1770, 0.0
    %v2024 = vmax.f32 %v1809, 0.0
    %v2025 = vmax.f32 %v1811, 0.0
    %v2026 = vmax.f32 %v1850, 0.0
    %v2027 = vmax.f32 %v1852, 0.0
    %v2028 = vmax.f32 %v1891, 0.0
    %v2029 = vmax.f32 %v1893, 0.0
    %v2030 = vmax.f32 %v1932, 0.0
    %v2031 = vmax.f32 %v1934, 0.0
    %v2032 = vmax.f32 %v1973, 0.0
    %v2033 = vmax.f32 %v1975, 0.0
    %v2034 = vmax.f32 %v2014, 0.0
    %v2035 = vmax.f32 %v2016, 0.0
    %v2052 = vcombine.low %v2020, %v2021
    %v2053 = vcombine.low %v2022, %v2023
    %v2055 = vunpack.c.l.s4 1983009808
    %v2056 = vunpack.c.0.s8 %v2055
    %v2057 = vlaneseq
    %v2058 = vshrl.u32 %v2057, 7
    %v2059 = vsub.s32 %v2056, %v2058
    %v2060 = vrot.slane %v2052, %v2059
    %v2062 = vunpack.c.l.s4 1983009808
    %v2063 = vunpack.c.0.s8 %v2062
    %v2064 = vlaneseq
    %v2065 = vshrl.u32 %v2064, 7
    %v2066 = vsub.s32 %v2063, %v2065
    %v2067 = vrot.slane %v2053, %v2066
    %v2068 = vcombine.low %v2060, %v2067
    %v2069 = vcombine.low %v2024, %v2025
    %v2070 = vcombine.low %v2026, %v2027
    %v2072 = vunpack.c.l.s4 1983009808
    %v2073 = vunpack.c.0.s8 %v2072
    %v2074 = vlaneseq
    %v2075 = vshrl.u32 %v2074, 7
    %v2076 = vsub.s32 %v2073, %v2075
    %v2077 = vrot.slane %v2069, %v2076
    %v2079 = vunpack.c.l.s4 1983009808
    %v2080 = vunpack.c.0.s8 %v2079
    %v2081 = vlaneseq
    %v2082 = vshrl.u32 %v2081, 7
    %v2083 = vsub.s32 %v2080, %v2082
    %v2084 = vrot.slane %v2070, %v2083
    %v2085 = vcombine.low %v2077, %v2084
    %v2086 = vcombine.low %v2028, %v2029
    %v2087 = vcombine.low %v2030, %v2031
    %v2089 = vunpack.c.l.s4 1983009808
    %v2090 = vunpack.c.0.s8 %v2089
    %v2091 = vlaneseq
    %v2092 = vshrl.u32 %v2091, 7
    %v2093 = vsub.s32 %v2090, %v2092
    %v2094 = vrot.slane %v2086, %v2093
    %v2096 = vunpack.c.l.s4 1983009808
    %v2097 = vunpack.c.0.s8 %v2096
    %v2098 = vlaneseq
    %v2099 = vshrl.u32 %v2098, 7
    %v2100 = vsub.s32 %v2097, %v2099
    %v2101 = vrot.slane %v2087, %v2100
    %v2102 = vcombine.low %v2094, %v2101
    %v2103 = vcombine.low %v2032, %v2033
    %v2104 = vcombine.low %v2034, %v2035
    %v2106 = vunpack.c.l.s4 1983009808
    %v2107 = vunpack.c.0.s8 %v2106
    %v2108 = vlaneseq
    %v2109 = vshrl.u32 %v2108, 7
    %v2110 = vsub.s32 %v2107, %v2109
    %v2111 = vrot.slane %v2103, %v2110
    %v2113 = vunpack.c.l.s4 1983009808
    %v2114 = vunpack.c.0.s8 %v2113
    %v2115 = vlaneseq
    %v2116 = vshrl.u32 %v2115, 7
    %v2117 = vsub.s32 %v2114, %v2116
    %v2118 = vrot.slane %v2104, %v2117
    %v2119 = vcombine.low %v2111, %v2118
    %2124 = vst [vmem:[%s4] sm:$0xff] %v2068
    %2125 = vst [vmem:[%s4 + $0x8] sm:$0xff] %v2085
    %2126 = vst [vmem:[%s4 + $0x10] sm:$0xff] %v2102
    %2127 = vst [vmem:[%s4 + $0x18] sm:$0xff] %v2119
    // Predicated region
    $region30: #{proj_forward.1} parent=1 // pred_check
      _
    $region31: #{proj_forward.1} parent=1 // pred_check_branch
      %2129 = sbr.rel (0) target = $region33
    $region32: #{proj_forward.1} parent=1 // pred_region
      _
    $region33: #{proj_forward.1} parent=1 // pred_fallthru
      _
    // Predicated region
    $region34: #{proj_forward.1} parent=1 // pred_check
      _
    $region35: #{proj_forward.1} parent=1 // pred_check_branch
      %2131 = sbr.rel (0) target = $region37
    $region36: #{proj_forward.1} parent=1 // pred_region
      _
    $region37: #{proj_forward.1} parent=1 // pred_fallthru
      _
    %2132 = vsyncpa [#allocation3], 1
    %2133 = vsyncpa [#allocation5], 1

</llo_original>
